<compile_context>
chip_gen: v5e
topology: v5e:2x2
jax: 0.10.0
libtpu: 0.0.40
codegen_flags: <defaults>
</compile_context>

<pallas_src>
import math

import jax
import jax.numpy as jnp
import numpy as np
from jax import lax
from jax.experimental import pallas as pl
from jax.experimental.pallas import tpu as pltpu


# ----------------------------------------------------------------------------
# Fused kernel: cross-attention -> fused bidirectional LSTM -> out1 @ out2^T
# ----------------------------------------------------------------------------
def fused_cat_bilstm_kernel(x1_ref, x2_ref,
                            w_s1_ref, b_s1_ref, w_s2_ref, b_s2_ref,
                            wo_ref, bo_ref,
                            wih_ref, bih_ref, whh_ref,
                            res_ref):
    f32 = jnp.float32
    B, S, _ = res_ref.shape                  # wrapper guarantees S1 == S2 == S
    D = x1_ref.shape[1]
    H = whh_ref.shape[0] // 2
    N = 2 * B
    H2, H3, H4, H6, H8 = 2 * H, 3 * H, 4 * H, 6 * H, 8 * H
    scale = 1.0 / math.sqrt(D)

    # ------------------------- cross attention -------------------------
    x1 = x1_ref[...]                         # (B*S, D), rows ordered (batch, time)
    x2 = x2_ref[...]
    # Fused per-sequence QKV projections (one tall matmul per sequence).
    #   p1 columns: [ q1 | k (dir-2) | v (dir-2) ]
    #   p2 columns: [ q2 | k (dir-1) | v (dir-1) ]
    p1 = (jnp.dot(x1, w_s1_ref[...], preferred_element_type=f32)
          + b_s1_ref[...]).reshape(B, S, 3 * D)
    p2 = (jnp.dot(x2, w_s2_ref[...], preferred_element_type=f32)
          + b_s2_ref[...]).reshape(B, S, 3 * D)

    def softmax_last(s):
        m = jnp.max(s, axis=-1, keepdims=True)
        e = jnp.exp(s - m)
        return e * pl.reciprocal(jnp.sum(e, axis=-1, keepdims=True), approx=True)

    def attend(q, k, v):                      # batched over B, dropout = identity
        s = jnp.einsum('bqd,bkd->bqk', q, k, preferred_element_type=f32) * scale
        return jnp.einsum('bqk,bkd->bqd', softmax_last(s), v,
                          preferred_element_type=f32)

    o1 = attend(p1[..., 0:D], p2[..., D:2 * D], p2[..., 2 * D:3 * D])   # (B,S,D)
    o2 = attend(p2[..., 0:D], p1[..., D:2 * D], p1[..., 2 * D:3 * D])   # (B,S,D)

    # Shared output projection applied once to the 2B stacked sequences.
    o_cat = jnp.concatenate([o1.reshape(B * S, D), o2.reshape(B * S, D)], axis=0)
    y = jnp.dot(o_cat, wo_ref[...], preferred_element_type=f32) + bo_ref[...]  # (N*S, O)

    # ---------------- fused bidirectional LSTM (single time loop) ----------------
    # Row-reorder y time-major ONCE (before the Wih matmul) so every per-step gate
    # input below is a contiguous (N, 4H) slab instead of a strided gather.
    seqs = [y[n * S:(n + 1) * S, :] for n in range(N)]                  # N x (S, O)
    y_tm = jnp.concatenate(
        [seqs[n][s:s + 1, :] for s in range(S) for n in range(N)], axis=0)  # (S*N, O)

    # Hoisted input projection for BOTH directions in one matmul.
    # Column layout (gate-permuted in the wrapper): [ fwd: i f o g | bwd: i f o g ].
    gin = (jnp.dot(y_tm, wih_ref[...], preferred_element_type=f32)
           + bih_ref[...])                                              # (S*N, 8H)

    # Per-step combined gate inputs, interleaved per gate so gate slices stay
    # contiguous: [ i_f i_b | f_f f_b | o_f o_b | g_f g_b ].
    # Forward direction consumes time t, backward consumes time S-1-t.
    g_steps = []
    for t in range(S):
        gf = gin[t * N:(t + 1) * N, 0:H4]
        gb = gin[(S - 1 - t) * N:(S - t) * N, H4:H8]
        g_steps.append(jnp.concatenate(
            [gf[:, 0:H],   gb[:, 0:H],
             gf[:, H:H2],  gb[:, H:H2],
             gf[:, H2:H3], gb[:, H2:H3],
             gf[:, H3:H4], gb[:, H3:H4]], axis=-1))                     # (N, 8H)

    whh = whh_ref[...]                       # (2H, 8H) block-diagonal, interleaved cols
    h = jnp.zeros((N, H2), f32)              # [h_fwd | h_bwd], carried in vregs
    c = jnp.zeros((N, H2), f32)
    hs = []
    for t in range(S):                       # fully unrolled; ONE MXU push per step
        g = g_steps[t] + jnp.dot(h, whh, preferred_element_type=f32)    # (N, 8H)
        sg = jax.nn.sigmoid(g[:, 0:H6])      # i, f, o gates only
        gg = jnp.tanh(g[:, H6:H8])           # g gate only
        i_g = sg[:, 0:H2]
        f_g = sg[:, H2:H4]
        o_g = sg[:, H4:H6]
        c = f_g * c + i_g * gg
        h = o_g * jnp.tanh(c)
        hs.append(h)                         # history stays in registers

    # --------------------- result = output1 @ output2^T ---------------------
    # Bi-LSTM output at time t = [h_fwd(step t) | h_bwd(step S-1-t)]; the 2H
    # contraction fuses both directions into a single dot per batch.
    out_t = [jnp.concatenate([hs[t][:, 0:H], hs[S - 1 - t][:, H:H2]], axis=-1)
             for t in range(S)]              # S x (N, 2H)
    res_list = []
    for b in range(B):
        o1b = jnp.concatenate([out_t[t][b:b + 1, :] for t in range(S)], axis=0)
        o2b = jnp.concatenate([out_t[t][B + b:B + b + 1, :] for t in range(S)], axis=0)
        res_list.append(lax.dot_general(o1b, o2b, (((1,), (1,)), ((), ())),
                                        preferred_element_type=f32))
    res_ref[...] = jnp.stack(res_list, axis=0)   # single stacked store


# ----------------------------------------------------------------------------
# Wrapper: weight packing / gate permutation is layout plumbing, done in JAX.
# ----------------------------------------------------------------------------
def cat_bilstm_forward(X_ag, X_ab, p_ca, p_lstm):
    B, S1, D = X_ag.shape
    S2 = X_ab.shape[1]
    if S1 != S2:
        # TODO(synk): unequal sequence lengths need two separate stacked LSTM passes.
        raise NotImplementedError("fused kernel assumes S1 == S2")
    H = p_lstm["whh_f"].shape[0]

    # Per-sequence fused QKV weights:
    #   seq1 needs: q (dir-1 query), k & v (dir-2 key/value)
    #   seq2 needs: q (dir-2 query), k & v (dir-1 key/value)
    w_s1 = jnp.concatenate([p_ca["wq1"], p_ca["wk2"], p_ca["wv2"]], axis=1)
    b_s1 = jnp.concatenate([p_ca["bq1"], p_ca["bk2"], p_ca["bv2"]], axis=1)
    w_s2 = jnp.concatenate([p_ca["wq2"], p_ca["wk1"], p_ca["wv1"]], axis=1)
    b_s2 = jnp.concatenate([p_ca["bq2"], p_ca["bk1"], p_ca["bv1"]], axis=1)

    # Gate permutation [i, f, g, o] -> [i, f, o, g] so sigmoid / tanh column
    # ranges are contiguous inside the kernel.
    def perm(w):
        i, f, g, o = jnp.split(w, 4, axis=-1)
        return jnp.concatenate([i, f, o, g], axis=-1)

    wih_cat = jnp.concatenate([perm(p_lstm["wih_f"]), perm(p_lstm["wih_b"])], axis=1)
    b_cat = jnp.concatenate([perm(p_lstm["b_f"]), perm(p_lstm["b_b"])], axis=1)

    # Block-diagonal recurrent weight (2H, 8H): rows 0:H (h_fwd) feed the forward
    # gate columns, rows H:2H (h_bwd) feed the backward gate columns, with the
    # per-gate fwd/bwd interleaving the kernel expects.
    whh_fp = perm(p_lstm["whh_f"])           # (H, 4H)
    whh_bp = perm(p_lstm["whh_b"])
    zcol = jnp.zeros((H, H), jnp.float32)
    col_blocks = []
    for k in range(4):
        col_blocks.append(jnp.concatenate([whh_fp[:, k * H:(k + 1) * H], zcol], axis=0))
        col_blocks.append(jnp.concatenate([zcol, whh_bp[:, k * H:(k + 1) * H]], axis=0))
    whh_comb = jnp.concatenate(col_blocks, axis=1)            # (2H, 8H)

    # Fold batch into rows (layout plumbing outside the kernel).
    x1 = X_ag.reshape(B * S1, D)
    x2 = X_ab.reshape(B * S2, D)

    return pl.pallas_call(
        fused_cat_bilstm_kernel,
        out_shape=jax.ShapeDtypeStruct((B, S1, S2), jnp.float32),
    )(x1, x2, w_s1, b_s1, w_s2, b_s2, p_ca["wo"], p_ca["bo"],
      wih_cat, b_cat, whh_comb)


cat_bilstm_forward_jit = jax.jit(cat_bilstm_forward)


# ----------------------------------------------------------------------------
# Pure-JAX reference (correctness smoke-test).
# ----------------------------------------------------------------------------
def ref_cross_attention(seq1, seq2, p):
    lin = lambda x, w, b: x @ w + b[0]
    d = seq1.shape[-1]
    q1 = lin(seq1, p["wq1"], p["bq1"]); k2 = lin(seq2, p["wk1"], p["bk1"])
    v2 = lin(seq2, p["wv1"], p["bv1"])
    a1 = jax.nn.softmax(jnp.einsum('bqd,bkd->bqk', q1, k2) / math.sqrt(d), axis=-1)
    o1 = jnp.einsum('bqk,bkd->bqd', a1, v2)
    q2 = lin(seq2, p["wq2"], p["bq2"]); k1 = lin(seq1, p["wk2"], p["bk2"])
    v1 = lin(seq1, p["wv2"], p["bv2"])
    a2 = jax.nn.softmax(jnp.einsum('bqd,bkd->bqk', q2, k1) / math.sqrt(d), axis=-1)
    o2 = jnp.einsum('bqk,bkd->bqd', a2, v1)
    return lin(o1, p["wo"], p["bo"]), lin(o2, p["wo"], p["bo"])


def ref_bilstm(x, p):
    H = p["whh_f"].shape[0]

    def run_dir(x, wih, whh, b):
        def step(carry, xt):
            h, c = carry
            g = xt @ wih + h @ whh + b[0]
            i = jax.nn.sigmoid(g[:, 0:H]); f = jax.nn.sigmoid(g[:, H:2 * H])
            gg = jnp.tanh(g[:, 2 * H:3 * H]); o = jax.nn.sigmoid(g[:, 3 * H:4 * H])
            c = f * c + i * gg
            h = o * jnp.tanh(c)
            return (h, c), h
        B = x.shape[0]
        init = (jnp.zeros((B, H), jnp.float32), jnp.zeros((B, H), jnp.float32))
        _, ys = lax.scan(step, init, jnp.swapaxes(x, 0, 1))
        return jnp.swapaxes(ys, 0, 1)

    yf = run_dir(x, p["wih_f"], p["whh_f"], p["b_f"])
    yb = run_dir(x[:, ::-1, :], p["wih_b"], p["whh_b"], p["b_b"])[:, ::-1, :]
    return jnp.concatenate([yf, yb], axis=-1)


def ref_forward(X_ag, X_ab, p_ca, p_lstm):
    ag, ab = ref_cross_attention(X_ag, X_ab, p_ca)
    o1 = ref_bilstm(ag, p_lstm)
    o2 = ref_bilstm(ab, p_lstm)
    return jnp.einsum('bik,bjk->bij', o1, o2)


# ----------------------------------------------------------------------------
if __name__ == "__main__":
    # Small shapes consistent with the module (input_size=D, hidden=H, output=O).
    B, S1, S2, D, H, O = 2, 8, 8, 32, 32, 32

    key = jax.random.PRNGKey(0)
    ks = iter(jax.random.split(key, 32))
    norm = lambda shape, s=0.1: (s * jax.random.normal(next(ks), shape)).astype(jnp.float32)

    # CrossAttention parameters (weights as (in, out); biases as (1, out)).
    p_ca = {}
    for name in ("wq1", "wk1", "wv1", "wq2", "wk2", "wv2"):
        p_ca[name] = norm((D, D))
    for name in ("bq1", "bk1", "bv1", "bq2", "bk2", "bv2"):
        p_ca[name] = norm((1, D))
    p_ca["wo"] = norm((D, O))
    p_ca["bo"] = norm((1, O))

    # BiLSTM parameters (forward / backward directions, combined bias b_ih + b_hh).
    p_lstm = {
        "wih_f": norm((O, 4 * H)), "whh_f": norm((H, 4 * H)), "b_f": norm((1, 4 * H)),
        "wih_b": norm((O, 4 * H)), "whh_b": norm((H, 4 * H)), "b_b": norm((1, 4 * H)),
    }

    X_ag = jax.random.normal(next(ks), (B, S1, D), dtype=jnp.float32)
    X_ab = jax.random.normal(next(ks), (B, S2, D), dtype=jnp.float32)

    result = cat_bilstm_forward_jit(X_ag, X_ab, p_ca, p_lstm)
    result = jax.block_until_ready(result)

    expected = jax.block_until_ready(ref_forward(X_ag, X_ab, p_ca, p_lstm))
    assert result.shape == (B, S1, S2), result.shape
    np.testing.assert_allclose(np.asarray(result), np.asarray(expected),
                               rtol=1e-2, atol=1e-2)
    print("KERNEL_OK")
</pallas_src>

<mosaic_0001>
module attributes {stable_mosaic.version = 11 : i64} {
  func.func @fused_cat_bilstm_kernel(%arg0: memref<16x32xf32, #tpu.memory_space<vmem>>, %arg1: memref<16x32xf32, #tpu.memory_space<vmem>>, %arg2: memref<32x96xf32, #tpu.memory_space<vmem>>, %arg3: memref<1x96xf32, #tpu.memory_space<vmem>>, %arg4: memref<32x96xf32, #tpu.memory_space<vmem>>, %arg5: memref<1x96xf32, #tpu.memory_space<vmem>>, %arg6: memref<32x32xf32, #tpu.memory_space<vmem>>, %arg7: memref<1x32xf32, #tpu.memory_space<vmem>>, %arg8: memref<32x256xf32, #tpu.memory_space<vmem>>, %arg9: memref<1x256xf32, #tpu.memory_space<vmem>>, %arg10: memref<64x256xf32, #tpu.memory_space<vmem>>, %arg11: memref<2x8x8xf32, #tpu.memory_space<vmem>>) attributes {dimension_semantics = [], scalar_prefetch = 0 : i64, scratch_operands = 0 : i64, tpu.core_type = #tpu.core_type<tc>} {
    %c0 = arith.constant 0 : index
    %c0_0 = arith.constant 0 : index
    %0 = vector.load %arg0[%c0, %c0_0] : memref<16x32xf32, #tpu.memory_space<vmem>>, vector<16x32xf32>
    %c0_1 = arith.constant 0 : index
    %c0_2 = arith.constant 0 : index
    %1 = vector.load %arg1[%c0_1, %c0_2] : memref<16x32xf32, #tpu.memory_space<vmem>>, vector<16x32xf32>
    %c0_3 = arith.constant 0 : index
    %c0_4 = arith.constant 0 : index
    %2 = vector.load %arg2[%c0_3, %c0_4] : memref<32x96xf32, #tpu.memory_space<vmem>>, vector<32x96xf32>
    %cst = arith.constant dense<0.000000e+00> : vector<16x96xf32>
    %3 = tpu.matmul %0, %2, %cst {dimension_numbers = #tpu.dot_dimension_numbers<[1], [0], [0], [1], [0, 0, 1, 1], [], []>} : vector<16x32xf32>, vector<32x96xf32>, vector<16x96xf32> -> vector<16x96xf32>
    %c0_5 = arith.constant 0 : index
    %c0_6 = arith.constant 0 : index
    %4 = vector.load %arg3[%c0_5, %c0_6] : memref<1x96xf32, #tpu.memory_space<vmem>>, vector<1x96xf32>
    %5 = vector.broadcast %4 : vector<1x96xf32> to vector<16x96xf32>
    %6 = arith.addf %3, %5 : vector<16x96xf32>
    %7 = vector.shape_cast %6 : vector<16x96xf32> to vector<2x8x96xf32>
    %c0_7 = arith.constant 0 : index
    %c0_8 = arith.constant 0 : index
    %8 = vector.load %arg4[%c0_7, %c0_8] : memref<32x96xf32, #tpu.memory_space<vmem>>, vector<32x96xf32>
    %cst_9 = arith.constant dense<0.000000e+00> : vector<16x96xf32>
    %9 = tpu.matmul %1, %8, %cst_9 {dimension_numbers = #tpu.dot_dimension_numbers<[1], [0], [0], [1], [0, 0, 1, 1], [], []>} : vector<16x32xf32>, vector<32x96xf32>, vector<16x96xf32> -> vector<16x96xf32>
    %c0_10 = arith.constant 0 : index
    %c0_11 = arith.constant 0 : index
    %10 = vector.load %arg5[%c0_10, %c0_11] : memref<1x96xf32, #tpu.memory_space<vmem>>, vector<1x96xf32>
    %11 = vector.broadcast %10 : vector<1x96xf32> to vector<16x96xf32>
    %12 = arith.addf %9, %11 : vector<16x96xf32>
    %13 = vector.shape_cast %12 : vector<16x96xf32> to vector<2x8x96xf32>
    %14 = vector.extract_strided_slice %7 {offsets = [0, 0, 0], sizes = [2, 8, 32], strides = [1, 1, 1]} : vector<2x8x96xf32> to vector<2x8x32xf32>
    %15 = vector.extract_strided_slice %13 {offsets = [0, 0, 32], sizes = [2, 8, 32], strides = [1, 1, 1]} : vector<2x8x96xf32> to vector<2x8x32xf32>
    %16 = vector.extract_strided_slice %13 {offsets = [0, 0, 64], sizes = [2, 8, 32], strides = [1, 1, 1]} : vector<2x8x96xf32> to vector<2x8x32xf32>
    "tpu.trace_start"() <{level = 10 : i32, message = "bqd,bkd->bqk"}> : () -> ()
    %cst_12 = arith.constant dense<0.000000e+00> : vector<2x8x8xf32>
    %17 = tpu.matmul %14, %15, %cst_12 {dimension_numbers = #tpu.dot_dimension_numbers<[2], [2], [1], [1], [0, 0, 0, 1, 1, 1], [0], [0]>} : vector<2x8x32xf32>, vector<2x8x32xf32>, vector<2x8x8xf32> -> vector<2x8x8xf32>
    "tpu.trace_stop"() : () -> ()
    %cst_13 = arith.constant 0.176776692 : f32
    %18 = vector.broadcast %cst_13 : f32 to vector<2x8x8xf32>
    %19 = arith.mulf %17, %18 : vector<2x8x8xf32>
    %cst_14 = arith.constant dense<0xFF800000> : vector<2x8xf32>
    %20 = vector.multi_reduction <maximumf>, %19, %cst_14 [2] : vector<2x8x8xf32> to vector<2x8xf32>
    %21 = vector.shape_cast %20 : vector<2x8xf32> to vector<2x8x1xf32>
    %22 = vector.broadcast %21 : vector<2x8x1xf32> to vector<2x8x8xf32>
    %23 = arith.subf %19, %22 : vector<2x8x8xf32>
    %24 = math.exp %23 : vector<2x8x8xf32>
    %cst_15 = arith.constant dense<0.000000e+00> : vector<2x8xf32>
    %25 = vector.multi_reduction <add>, %24, %cst_15 [2] : vector<2x8x8xf32> to vector<2x8xf32>
    %26 = vector.shape_cast %25 : vector<2x8xf32> to vector<2x8x1xf32>
    %27 = tpu.reciprocal %26 {approx = true} : vector<2x8x1xf32> -> vector<2x8x1xf32>
    %28 = vector.broadcast %27 : vector<2x8x1xf32> to vector<2x8x8xf32>
    %29 = arith.mulf %24, %28 : vector<2x8x8xf32>
    "tpu.trace_start"() <{level = 10 : i32, message = "bqk,bkd->bqd"}> : () -> ()
    %cst_16 = arith.constant dense<0.000000e+00> : vector<2x8x32xf32>
    %30 = tpu.matmul %29, %16, %cst_16 {dimension_numbers = #tpu.dot_dimension_numbers<[2], [1], [1], [2], [0, 0, 0, 1, 1, 2], [0], [0]>} : vector<2x8x8xf32>, vector<2x8x32xf32>, vector<2x8x32xf32> -> vector<2x8x32xf32>
    "tpu.trace_stop"() : () -> ()
    %31 = vector.extract_strided_slice %13 {offsets = [0, 0, 0], sizes = [2, 8, 32], strides = [1, 1, 1]} : vector<2x8x96xf32> to vector<2x8x32xf32>
    %32 = vector.extract_strided_slice %7 {offsets = [0, 0, 32], sizes = [2, 8, 32], strides = [1, 1, 1]} : vector<2x8x96xf32> to vector<2x8x32xf32>
    %33 = vector.extract_strided_slice %7 {offsets = [0, 0, 64], sizes = [2, 8, 32], strides = [1, 1, 1]} : vector<2x8x96xf32> to vector<2x8x32xf32>
    "tpu.trace_start"() <{level = 10 : i32, message = "bqd,bkd->bqk"}> : () -> ()
    %cst_17 = arith.constant dense<0.000000e+00> : vector<2x8x8xf32>
    %34 = tpu.matmul %31, %32, %cst_17 {dimension_numbers = #tpu.dot_dimension_numbers<[2], [2], [1], [1], [0, 0, 0, 1, 1, 1], [0], [0]>} : vector<2x8x32xf32>, vector<2x8x32xf32>, vector<2x8x8xf32> -> vector<2x8x8xf32>
    "tpu.trace_stop"() : () -> ()
    %cst_18 = arith.constant 0.176776692 : f32
    %35 = vector.broadcast %cst_18 : f32 to vector<2x8x8xf32>
    %36 = arith.mulf %34, %35 : vector<2x8x8xf32>
    %cst_19 = arith.constant dense<0xFF800000> : vector<2x8xf32>
    %37 = vector.multi_reduction <maximumf>, %36, %cst_19 [2] : vector<2x8x8xf32> to vector<2x8xf32>
    %38 = vector.shape_cast %37 : vector<2x8xf32> to vector<2x8x1xf32>
    %39 = vector.broadcast %38 : vector<2x8x1xf32> to vector<2x8x8xf32>
    %40 = arith.subf %36, %39 : vector<2x8x8xf32>
    %41 = math.exp %40 : vector<2x8x8xf32>
    %cst_20 = arith.constant dense<0.000000e+00> : vector<2x8xf32>
    %42 = vector.multi_reduction <add>, %41, %cst_20 [2] : vector<2x8x8xf32> to vector<2x8xf32>
    %43 = vector.shape_cast %42 : vector<2x8xf32> to vector<2x8x1xf32>
    %44 = tpu.reciprocal %43 {approx = true} : vector<2x8x1xf32> -> vector<2x8x1xf32>
    %45 = vector.broadcast %44 : vector<2x8x1xf32> to vector<2x8x8xf32>
    %46 = arith.mulf %41, %45 : vector<2x8x8xf32>
    "tpu.trace_start"() <{level = 10 : i32, message = "bqk,bkd->bqd"}> : () -> ()
    %cst_21 = arith.constant dense<0.000000e+00> : vector<2x8x32xf32>
    %47 = tpu.matmul %46, %33, %cst_21 {dimension_numbers = #tpu.dot_dimension_numbers<[2], [1], [1], [2], [0, 0, 0, 1, 1, 2], [0], [0]>} : vector<2x8x8xf32>, vector<2x8x32xf32>, vector<2x8x32xf32> -> vector<2x8x32xf32>
    "tpu.trace_stop"() : () -> ()
    %48 = vector.shape_cast %30 : vector<2x8x32xf32> to vector<16x32xf32>
    %49 = vector.shape_cast %47 : vector<2x8x32xf32> to vector<16x32xf32>
    %50 = tpu.concatenate %48, %49 in 0 : vector<16x32xf32>, vector<16x32xf32> -> vector<32x32xf32>
    %c0_22 = arith.constant 0 : index
    %c0_23 = arith.constant 0 : index
    %51 = vector.load %arg6[%c0_22, %c0_23] : memref<32x32xf32, #tpu.memory_space<vmem>>, vector<32x32xf32>
    %cst_24 = arith.constant dense<0.000000e+00> : vector<32x32xf32>
    %52 = tpu.matmul %50, %51, %cst_24 {dimension_numbers = #tpu.dot_dimension_numbers<[1], [0], [0], [1], [0, 0, 1, 1], [], []>} : vector<32x32xf32>, vector<32x32xf32>, vector<32x32xf32> -> vector<32x32xf32>
    %c0_25 = arith.constant 0 : index
    %c0_26 = arith.constant 0 : index
    %53 = vector.load %arg7[%c0_25, %c0_26] : memref<1x32xf32, #tpu.memory_space<vmem>>, vector<1x32xf32>
    %54 = vector.broadcast %53 : vector<1x32xf32> to vector<32x32xf32>
    %55 = arith.addf %52, %54 : vector<32x32xf32>
    %56 = vector.extract_strided_slice %55 {offsets = [0, 0], sizes = [8, 32], strides = [1, 1]} : vector<32x32xf32> to vector<8x32xf32>
    %57 = vector.extract_strided_slice %55 {offsets = [8, 0], sizes = [8, 32], strides = [1, 1]} : vector<32x32xf32> to vector<8x32xf32>
    %58 = vector.extract_strided_slice %55 {offsets = [16, 0], sizes = [8, 32], strides = [1, 1]} : vector<32x32xf32> to vector<8x32xf32>
    %59 = vector.extract_strided_slice %55 {offsets = [24, 0], sizes = [8, 32], strides = [1, 1]} : vector<32x32xf32> to vector<8x32xf32>
    %60 = vector.extract_strided_slice %56 {offsets = [0, 0], sizes = [1, 32], strides = [1, 1]} : vector<8x32xf32> to vector<1x32xf32>
    %61 = vector.extract_strided_slice %57 {offsets = [0, 0], sizes = [1, 32], strides = [1, 1]} : vector<8x32xf32> to vector<1x32xf32>
    %62 = vector.extract_strided_slice %58 {offsets = [0, 0], sizes = [1, 32], strides = [1, 1]} : vector<8x32xf32> to vector<1x32xf32>
    %63 = vector.extract_strided_slice %59 {offsets = [0, 0], sizes = [1, 32], strides = [1, 1]} : vector<8x32xf32> to vector<1x32xf32>
    %64 = vector.extract_strided_slice %56 {offsets = [1, 0], sizes = [1, 32], strides = [1, 1]} : vector<8x32xf32> to vector<1x32xf32>
    %65 = vector.extract_strided_slice %57 {offsets = [1, 0], sizes = [1, 32], strides = [1, 1]} : vector<8x32xf32> to vector<1x32xf32>
    %66 = vector.extract_strided_slice %58 {offsets = [1, 0], sizes = [1, 32], strides = [1, 1]} : vector<8x32xf32> to vector<1x32xf32>
    %67 = vector.extract_strided_slice %59 {offsets = [1, 0], sizes = [1, 32], strides = [1, 1]} : vector<8x32xf32> to vector<1x32xf32>
    %68 = vector.extract_strided_slice %56 {offsets = [2, 0], sizes = [1, 32], strides = [1, 1]} : vector<8x32xf32> to vector<1x32xf32>
    %69 = vector.extract_strided_slice %57 {offsets = [2, 0], sizes = [1, 32], strides = [1, 1]} : vector<8x32xf32> to vector<1x32xf32>
    %70 = vector.extract_strided_slice %58 {offsets = [2, 0], sizes = [1, 32], strides = [1, 1]} : vector<8x32xf32> to vector<1x32xf32>
    %71 = vector.extract_strided_slice %59 {offsets = [2, 0], sizes = [1, 32], strides = [1, 1]} : vector<8x32xf32> to vector<1x32xf32>
    %72 = vector.extract_strided_slice %56 {offsets = [3, 0], sizes = [1, 32], strides = [1, 1]} : vector<8x32xf32> to vector<1x32xf32>
    %73 = vector.extract_strided_slice %57 {offsets = [3, 0], sizes = [1, 32], strides = [1, 1]} : vector<8x32xf32> to vector<1x32xf32>
    %74 = vector.extract_strided_slice %58 {offsets = [3, 0], sizes = [1, 32], strides = [1, 1]} : vector<8x32xf32> to vector<1x32xf32>
    %75 = vector.extract_strided_slice %59 {offsets = [3, 0], sizes = [1, 32], strides = [1, 1]} : vector<8x32xf32> to vector<1x32xf32>
    %76 = vector.extract_strided_slice %56 {offsets = [4, 0], sizes = [1, 32], strides = [1, 1]} : vector<8x32xf32> to vector<1x32xf32>
    %77 = vector.extract_strided_slice %57 {offsets = [4, 0], sizes = [1, 32], strides = [1, 1]} : vector<8x32xf32> to vector<1x32xf32>
    %78 = vector.extract_strided_slice %58 {offsets = [4, 0], sizes = [1, 32], strides = [1, 1]} : vector<8x32xf32> to vector<1x32xf32>
    %79 = vector.extract_strided_slice %59 {offsets = [4, 0], sizes = [1, 32], strides = [1, 1]} : vector<8x32xf32> to vector<1x32xf32>
    %80 = vector.extract_strided_slice %56 {offsets = [5, 0], sizes = [1, 32], strides = [1, 1]} : vector<8x32xf32> to vector<1x32xf32>
    %81 = vector.extract_strided_slice %57 {offsets = [5, 0], sizes = [1, 32], strides = [1, 1]} : vector<8x32xf32> to vector<1x32xf32>
    %82 = vector.extract_strided_slice %58 {offsets = [5, 0], sizes = [1, 32], strides = [1, 1]} : vector<8x32xf32> to vector<1x32xf32>
    %83 = vector.extract_strided_slice %59 {offsets = [5, 0], sizes = [1, 32], strides = [1, 1]} : vector<8x32xf32> to vector<1x32xf32>
    %84 = vector.extract_strided_slice %56 {offsets = [6, 0], sizes = [1, 32], strides = [1, 1]} : vector<8x32xf32> to vector<1x32xf32>
    %85 = vector.extract_strided_slice %57 {offsets = [6, 0], sizes = [1, 32], strides = [1, 1]} : vector<8x32xf32> to vector<1x32xf32>
    %86 = vector.extract_strided_slice %58 {offsets = [6, 0], sizes = [1, 32], strides = [1, 1]} : vector<8x32xf32> to vector<1x32xf32>
    %87 = vector.extract_strided_slice %59 {offsets = [6, 0], sizes = [1, 32], strides = [1, 1]} : vector<8x32xf32> to vector<1x32xf32>
    %88 = vector.extract_strided_slice %56 {offsets = [7, 0], sizes = [1, 32], strides = [1, 1]} : vector<8x32xf32> to vector<1x32xf32>
    %89 = vector.extract_strided_slice %57 {offsets = [7, 0], sizes = [1, 32], strides = [1, 1]} : vector<8x32xf32> to vector<1x32xf32>
    %90 = vector.extract_strided_slice %58 {offsets = [7, 0], sizes = [1, 32], strides = [1, 1]} : vector<8x32xf32> to vector<1x32xf32>
    %91 = vector.extract_strided_slice %59 {offsets = [7, 0], sizes = [1, 32], strides = [1, 1]} : vector<8x32xf32> to vector<1x32xf32>
    %92 = tpu.concatenate %60, %61, %62, %63, %64, %65, %66, %67, %68, %69, %70, %71, %72, %73, %74, %75 in 0 : vector<1x32xf32>, vector<1x32xf32>, vector<1x32xf32>, vector<1x32xf32>, vector<1x32xf32>, vector<1x32xf32>, vector<1x32xf32>, vector<1x32xf32>, vector<1x32xf32>, vector<1x32xf32>, vector<1x32xf32>, vector<1x32xf32>, vector<1x32xf32>, vector<1x32xf32>, vector<1x32xf32>, vector<1x32xf32> -> vector<16x32xf32>
    %93 = tpu.concatenate %76, %77, %78, %79, %80, %81, %82, %83, %84, %85, %86, %87, %88, %89, %90, %91 in 0 : vector<1x32xf32>, vector<1x32xf32>, vector<1x32xf32>, vector<1x32xf32>, vector<1x32xf32>, vector<1x32xf32>, vector<1x32xf32>, vector<1x32xf32>, vector<1x32xf32>, vector<1x32xf32>, vector<1x32xf32>, vector<1x32xf32>, vector<1x32xf32>, vector<1x32xf32>, vector<1x32xf32>, vector<1x32xf32> -> vector<16x32xf32>
    %94 = tpu.concatenate %92, %93 in 0 : vector<16x32xf32>, vector<16x32xf32> -> vector<32x32xf32>
    %c0_27 = arith.constant 0 : index
    %c0_28 = arith.constant 0 : index
    %95 = vector.load %arg8[%c0_27, %c0_28] : memref<32x256xf32, #tpu.memory_space<vmem>>, vector<32x256xf32>
    %cst_29 = arith.constant dense<0.000000e+00> : vector<32x256xf32>
    %96 = tpu.matmul %94, %95, %cst_29 {dimension_numbers = #tpu.dot_dimension_numbers<[1], [0], [0], [1], [0, 0, 1, 1], [], []>} : vector<32x32xf32>, vector<32x256xf32>, vector<32x256xf32> -> vector<32x256xf32>
    %c0_30 = arith.constant 0 : index
    %c0_31 = arith.constant 0 : index
    %97 = vector.load %arg9[%c0_30, %c0_31] : memref<1x256xf32, #tpu.memory_space<vmem>>, vector<1x256xf32>
    %98 = vector.broadcast %97 : vector<1x256xf32> to vector<32x256xf32>
    %99 = arith.addf %96, %98 : vector<32x256xf32>
    %100 = vector.extract_strided_slice %99 {offsets = [0, 0], sizes = [4, 128], strides = [1, 1]} : vector<32x256xf32> to vector<4x128xf32>
    %101 = vector.extract_strided_slice %99 {offsets = [28, 128], sizes = [4, 128], strides = [1, 1]} : vector<32x256xf32> to vector<4x128xf32>
    %102 = vector.extract_strided_slice %100 {offsets = [0, 0], sizes = [4, 32], strides = [1, 1]} : vector<4x128xf32> to vector<4x32xf32>
    %103 = vector.extract_strided_slice %101 {offsets = [0, 0], sizes = [4, 32], strides = [1, 1]} : vector<4x128xf32> to vector<4x32xf32>
    %104 = vector.extract_strided_slice %100 {offsets = [0, 32], sizes = [4, 32], strides = [1, 1]} : vector<4x128xf32> to vector<4x32xf32>
    %105 = vector.extract_strided_slice %101 {offsets = [0, 32], sizes = [4, 32], strides = [1, 1]} : vector<4x128xf32> to vector<4x32xf32>
    %106 = vector.extract_strided_slice %100 {offsets = [0, 64], sizes = [4, 32], strides = [1, 1]} : vector<4x128xf32> to vector<4x32xf32>
    %107 = vector.extract_strided_slice %101 {offsets = [0, 64], sizes = [4, 32], strides = [1, 1]} : vector<4x128xf32> to vector<4x32xf32>
    %108 = vector.extract_strided_slice %100 {offsets = [0, 96], sizes = [4, 32], strides = [1, 1]} : vector<4x128xf32> to vector<4x32xf32>
    %109 = vector.extract_strided_slice %101 {offsets = [0, 96], sizes = [4, 32], strides = [1, 1]} : vector<4x128xf32> to vector<4x32xf32>
    %110 = tpu.concatenate %102, %103, %104, %105, %106, %107, %108, %109 in 1 : vector<4x32xf32>, vector<4x32xf32>, vector<4x32xf32>, vector<4x32xf32>, vector<4x32xf32>, vector<4x32xf32>, vector<4x32xf32>, vector<4x32xf32> -> vector<4x256xf32>
    %111 = vector.extract_strided_slice %99 {offsets = [4, 0], sizes = [4, 128], strides = [1, 1]} : vector<32x256xf32> to vector<4x128xf32>
    %112 = vector.extract_strided_slice %99 {offsets = [24, 128], sizes = [4, 128], strides = [1, 1]} : vector<32x256xf32> to vector<4x128xf32>
    %113 = vector.extract_strided_slice %111 {offsets = [0, 0], sizes = [4, 32], strides = [1, 1]} : vector<4x128xf32> to vector<4x32xf32>
    %114 = vector.extract_strided_slice %112 {offsets = [0, 0], sizes = [4, 32], strides = [1, 1]} : vector<4x128xf32> to vector<4x32xf32>
    %115 = vector.extract_strided_slice %111 {offsets = [0, 32], sizes = [4, 32], strides = [1, 1]} : vector<4x128xf32> to vector<4x32xf32>
    %116 = vector.extract_strided_slice %112 {offsets = [0, 32], sizes = [4, 32], strides = [1, 1]} : vector<4x128xf32> to vector<4x32xf32>
    %117 = vector.extract_strided_slice %111 {offsets = [0, 64], sizes = [4, 32], strides = [1, 1]} : vector<4x128xf32> to vector<4x32xf32>
    %118 = vector.extract_strided_slice %112 {offsets = [0, 64], sizes = [4, 32], strides = [1, 1]} : vector<4x128xf32> to vector<4x32xf32>
    %119 = vector.extract_strided_slice %111 {offsets = [0, 96], sizes = [4, 32], strides = [1, 1]} : vector<4x128xf32> to vector<4x32xf32>
    %120 = vector.extract_strided_slice %112 {offsets = [0, 96], sizes = [4, 32], strides = [1, 1]} : vector<4x128xf32> to vector<4x32xf32>
    %121 = tpu.concatenate %113, %114, %115, %116, %117, %118, %119, %120 in 1 : vector<4x32xf32>, vector<4x32xf32>, vector<4x32xf32>, vector<4x32xf32>, vector<4x32xf32>, vector<4x32xf32>, vector<4x32xf32>, vector<4x32xf32> -> vector<4x256xf32>
    %122 = vector.extract_strided_slice %99 {offsets = [8, 0], sizes = [4, 128], strides = [1, 1]} : vector<32x256xf32> to vector<4x128xf32>
    %123 = vector.extract_strided_slice %99 {offsets = [20, 128], sizes = [4, 128], strides = [1, 1]} : vector<32x256xf32> to vector<4x128xf32>
    %124 = vector.extract_strided_slice %122 {offsets = [0, 0], sizes = [4, 32], strides = [1, 1]} : vector<4x128xf32> to vector<4x32xf32>
    %125 = vector.extract_strided_slice %123 {offsets = [0, 0], sizes = [4, 32], strides = [1, 1]} : vector<4x128xf32> to vector<4x32xf32>
    %126 = vector.extract_strided_slice %122 {offsets = [0, 32], sizes = [4, 32], strides = [1, 1]} : vector<4x128xf32> to vector<4x32xf32>
    %127 = vector.extract_strided_slice %123 {offsets = [0, 32], sizes = [4, 32], strides = [1, 1]} : vector<4x128xf32> to vector<4x32xf32>
    %128 = vector.extract_strided_slice %122 {offsets = [0, 64], sizes = [4, 32], strides = [1, 1]} : vector<4x128xf32> to vector<4x32xf32>
    %129 = vector.extract_strided_slice %123 {offsets = [0, 64], sizes = [4, 32], strides = [1, 1]} : vector<4x128xf32> to vector<4x32xf32>
    %130 = vector.extract_strided_slice %122 {offsets = [0, 96], sizes = [4, 32], strides = [1, 1]} : vector<4x128xf32> to vector<4x32xf32>
    %131 = vector.extract_strided_slice %123 {offsets = [0, 96], sizes = [4, 32], strides = [1, 1]} : vector<4x128xf32> to vector<4x32xf32>
    %132 = tpu.concatenate %124, %125, %126, %127, %128, %129, %130, %131 in 1 : vector<4x32xf32>, vector<4x32xf32>, vector<4x32xf32>, vector<4x32xf32>, vector<4x32xf32>, vector<4x32xf32>, vector<4x32xf32>, vector<4x32xf32> -> vector<4x256xf32>
    %133 = vector.extract_strided_slice %99 {offsets = [12, 0], sizes = [4, 128], strides = [1, 1]} : vector<32x256xf32> to vector<4x128xf32>
    %134 = vector.extract_strided_slice %99 {offsets = [16, 128], sizes = [4, 128], strides = [1, 1]} : vector<32x256xf32> to vector<4x128xf32>
    %135 = vector.extract_strided_slice %133 {offsets = [0, 0], sizes = [4, 32], strides = [1, 1]} : vector<4x128xf32> to vector<4x32xf32>
    %136 = vector.extract_strided_slice %134 {offsets = [0, 0], sizes = [4, 32], strides = [1, 1]} : vector<4x128xf32> to vector<4x32xf32>
    %137 = vector.extract_strided_slice %133 {offsets = [0, 32], sizes = [4, 32], strides = [1, 1]} : vector<4x128xf32> to vector<4x32xf32>
    %138 = vector.extract_strided_slice %134 {offsets = [0, 32], sizes = [4, 32], strides = [1, 1]} : vector<4x128xf32> to vector<4x32xf32>
    %139 = vector.extract_strided_slice %133 {offsets = [0, 64], sizes = [4, 32], strides = [1, 1]} : vector<4x128xf32> to vector<4x32xf32>
    %140 = vector.extract_strided_slice %134 {offsets = [0, 64], sizes = [4, 32], strides = [1, 1]} : vector<4x128xf32> to vector<4x32xf32>
    %141 = vector.extract_strided_slice %133 {offsets = [0, 96], sizes = [4, 32], strides = [1, 1]} : vector<4x128xf32> to vector<4x32xf32>
    %142 = vector.extract_strided_slice %134 {offsets = [0, 96], sizes = [4, 32], strides = [1, 1]} : vector<4x128xf32> to vector<4x32xf32>
    %143 = tpu.concatenate %135, %136, %137, %138, %139, %140, %141, %142 in 1 : vector<4x32xf32>, vector<4x32xf32>, vector<4x32xf32>, vector<4x32xf32>, vector<4x32xf32>, vector<4x32xf32>, vector<4x32xf32>, vector<4x32xf32> -> vector<4x256xf32>
    %144 = vector.extract_strided_slice %99 {offsets = [16, 0], sizes = [4, 128], strides = [1, 1]} : vector<32x256xf32> to vector<4x128xf32>
    %145 = vector.extract_strided_slice %99 {offsets = [12, 128], sizes = [4, 128], strides = [1, 1]} : vector<32x256xf32> to vector<4x128xf32>
    %146 = vector.extract_strided_slice %144 {offsets = [0, 0], sizes = [4, 32], strides = [1, 1]} : vector<4x128xf32> to vector<4x32xf32>
    %147 = vector.extract_strided_slice %145 {offsets = [0, 0], sizes = [4, 32], strides = [1, 1]} : vector<4x128xf32> to vector<4x32xf32>
    %148 = vector.extract_strided_slice %144 {offsets = [0, 32], sizes = [4, 32], strides = [1, 1]} : vector<4x128xf32> to vector<4x32xf32>
    %149 = vector.extract_strided_slice %145 {offsets = [0, 32], sizes = [4, 32], strides = [1, 1]} : vector<4x128xf32> to vector<4x32xf32>
    %150 = vector.extract_strided_slice %144 {offsets = [0, 64], sizes = [4, 32], strides = [1, 1]} : vector<4x128xf32> to vector<4x32xf32>
    %151 = vector.extract_strided_slice %145 {offsets = [0, 64], sizes = [4, 32], strides = [1, 1]} : vector<4x128xf32> to vector<4x32xf32>
    %152 = vector.extract_strided_slice %144 {offsets = [0, 96], sizes = [4, 32], strides = [1, 1]} : vector<4x128xf32> to vector<4x32xf32>
    %153 = vector.extract_strided_slice %145 {offsets = [0, 96], sizes = [4, 32], strides = [1, 1]} : vector<4x128xf32> to vector<4x32xf32>
    %154 = tpu.concatenate %146, %147, %148, %149, %150, %151, %152, %153 in 1 : vector<4x32xf32>, vector<4x32xf32>, vector<4x32xf32>, vector<4x32xf32>, vector<4x32xf32>, vector<4x32xf32>, vector<4x32xf32>, vector<4x32xf32> -> vector<4x256xf32>
    %155 = vector.extract_strided_slice %99 {offsets = [20, 0], sizes = [4, 128], strides = [1, 1]} : vector<32x256xf32> to vector<4x128xf32>
    %156 = vector.extract_strided_slice %99 {offsets = [8, 128], sizes = [4, 128], strides = [1, 1]} : vector<32x256xf32> to vector<4x128xf32>
    %157 = vector.extract_strided_slice %155 {offsets = [0, 0], sizes = [4, 32], strides = [1, 1]} : vector<4x128xf32> to vector<4x32xf32>
    %158 = vector.extract_strided_slice %156 {offsets = [0, 0], sizes = [4, 32], strides = [1, 1]} : vector<4x128xf32> to vector<4x32xf32>
    %159 = vector.extract_strided_slice %155 {offsets = [0, 32], sizes = [4, 32], strides = [1, 1]} : vector<4x128xf32> to vector<4x32xf32>
    %160 = vector.extract_strided_slice %156 {offsets = [0, 32], sizes = [4, 32], strides = [1, 1]} : vector<4x128xf32> to vector<4x32xf32>
    %161 = vector.extract_strided_slice %155 {offsets = [0, 64], sizes = [4, 32], strides = [1, 1]} : vector<4x128xf32> to vector<4x32xf32>
    %162 = vector.extract_strided_slice %156 {offsets = [0, 64], sizes = [4, 32], strides = [1, 1]} : vector<4x128xf32> to vector<4x32xf32>
    %163 = vector.extract_strided_slice %155 {offsets = [0, 96], sizes = [4, 32], strides = [1, 1]} : vector<4x128xf32> to vector<4x32xf32>
    %164 = vector.extract_strided_slice %156 {offsets = [0, 96], sizes = [4, 32], strides = [1, 1]} : vector<4x128xf32> to vector<4x32xf32>
    %165 = tpu.concatenate %157, %158, %159, %160, %161, %162, %163, %164 in 1 : vector<4x32xf32>, vector<4x32xf32>, vector<4x32xf32>, vector<4x32xf32>, vector<4x32xf32>, vector<4x32xf32>, vector<4x32xf32>, vector<4x32xf32> -> vector<4x256xf32>
    %166 = vector.extract_strided_slice %99 {offsets = [24, 0], sizes = [4, 128], strides = [1, 1]} : vector<32x256xf32> to vector<4x128xf32>
    %167 = vector.extract_strided_slice %99 {offsets = [4, 128], sizes = [4, 128], strides = [1, 1]} : vector<32x256xf32> to vector<4x128xf32>
    %168 = vector.extract_strided_slice %166 {offsets = [0, 0], sizes = [4, 32], strides = [1, 1]} : vector<4x128xf32> to vector<4x32xf32>
    %169 = vector.extract_strided_slice %167 {offsets = [0, 0], sizes = [4, 32], strides = [1, 1]} : vector<4x128xf32> to vector<4x32xf32>
    %170 = vector.extract_strided_slice %166 {offsets = [0, 32], sizes = [4, 32], strides = [1, 1]} : vector<4x128xf32> to vector<4x32xf32>
    %171 = vector.extract_strided_slice %167 {offsets = [0, 32], sizes = [4, 32], strides = [1, 1]} : vector<4x128xf32> to vector<4x32xf32>
    %172 = vector.extract_strided_slice %166 {offsets = [0, 64], sizes = [4, 32], strides = [1, 1]} : vector<4x128xf32> to vector<4x32xf32>
    %173 = vector.extract_strided_slice %167 {offsets = [0, 64], sizes = [4, 32], strides = [1, 1]} : vector<4x128xf32> to vector<4x32xf32>
    %174 = vector.extract_strided_slice %166 {offsets = [0, 96], sizes = [4, 32], strides = [1, 1]} : vector<4x128xf32> to vector<4x32xf32>
    %175 = vector.extract_strided_slice %167 {offsets = [0, 96], sizes = [4, 32], strides = [1, 1]} : vector<4x128xf32> to vector<4x32xf32>
    %176 = tpu.concatenate %168, %169, %170, %171, %172, %173, %174, %175 in 1 : vector<4x32xf32>, vector<4x32xf32>, vector<4x32xf32>, vector<4x32xf32>, vector<4x32xf32>, vector<4x32xf32>, vector<4x32xf32>, vector<4x32xf32> -> vector<4x256xf32>
    %177 = vector.extract_strided_slice %99 {offsets = [28, 0], sizes = [4, 128], strides = [1, 1]} : vector<32x256xf32> to vector<4x128xf32>
    %178 = vector.extract_strided_slice %99 {offsets = [0, 128], sizes = [4, 128], strides = [1, 1]} : vector<32x256xf32> to vector<4x128xf32>
    %179 = vector.extract_strided_slice %177 {offsets = [0, 0], sizes = [4, 32], strides = [1, 1]} : vector<4x128xf32> to vector<4x32xf32>
    %180 = vector.extract_strided_slice %178 {offsets = [0, 0], sizes = [4, 32], strides = [1, 1]} : vector<4x128xf32> to vector<4x32xf32>
    %181 = vector.extract_strided_slice %177 {offsets = [0, 32], sizes = [4, 32], strides = [1, 1]} : vector<4x128xf32> to vector<4x32xf32>
    %182 = vector.extract_strided_slice %178 {offsets = [0, 32], sizes = [4, 32], strides = [1, 1]} : vector<4x128xf32> to vector<4x32xf32>
    %183 = vector.extract_strided_slice %177 {offsets = [0, 64], sizes = [4, 32], strides = [1, 1]} : vector<4x128xf32> to vector<4x32xf32>
    %184 = vector.extract_strided_slice %178 {offsets = [0, 64], sizes = [4, 32], strides = [1, 1]} : vector<4x128xf32> to vector<4x32xf32>
    %185 = vector.extract_strided_slice %177 {offsets = [0, 96], sizes = [4, 32], strides = [1, 1]} : vector<4x128xf32> to vector<4x32xf32>
    %186 = vector.extract_strided_slice %178 {offsets = [0, 96], sizes = [4, 32], strides = [1, 1]} : vector<4x128xf32> to vector<4x32xf32>
    %187 = tpu.concatenate %179, %180, %181, %182, %183, %184, %185, %186 in 1 : vector<4x32xf32>, vector<4x32xf32>, vector<4x32xf32>, vector<4x32xf32>, vector<4x32xf32>, vector<4x32xf32>, vector<4x32xf32>, vector<4x32xf32> -> vector<4x256xf32>
    %c0_32 = arith.constant 0 : index
    %c0_33 = arith.constant 0 : index
    %188 = vector.load %arg10[%c0_32, %c0_33] : memref<64x256xf32, #tpu.memory_space<vmem>>, vector<64x256xf32>
    %cst_34 = arith.constant 0.000000e+00 : f32
    %189 = vector.broadcast %cst_34 : f32 to vector<4x64xf32>
    %cst_35 = arith.constant 0.000000e+00 : f32
    %190 = vector.broadcast %cst_35 : f32 to vector<4x64xf32>
    %cst_36 = arith.constant dense<0.000000e+00> : vector<4x256xf32>
    %191 = tpu.matmul %189, %188, %cst_36 {dimension_numbers = #tpu.dot_dimension_numbers<[1], [0], [0], [1], [0, 0, 1, 1], [], []>} : vector<4x64xf32>, vector<64x256xf32>, vector<4x256xf32> -> vector<4x256xf32>
    %192 = arith.addf %110, %191 : vector<4x256xf32>
    %193 = vector.extract_strided_slice %192 {offsets = [0, 0], sizes = [4, 192], strides = [1, 1]} : vector<4x256xf32> to vector<4x192xf32>
    %194 = arith.negf %193 : vector<4x192xf32>
    %195 = math.exp %194 : vector<4x192xf32>
    %cst_37 = arith.constant 1.000000e+00 : f32
    %196 = vector.broadcast %cst_37 : f32 to vector<4x192xf32>
    %197 = arith.addf %196, %195 : vector<4x192xf32>
    %198 = arith.divf %196, %197 : vector<4x192xf32>
    %199 = vector.extract_strided_slice %192 {offsets = [0, 192], sizes = [4, 64], strides = [1, 1]} : vector<4x256xf32> to vector<4x64xf32>
    %200 = math.tanh %199 : vector<4x64xf32>
    %201 = vector.extract_strided_slice %198 {offsets = [0, 0], sizes = [4, 64], strides = [1, 1]} : vector<4x192xf32> to vector<4x64xf32>
    %202 = vector.extract_strided_slice %198 {offsets = [0, 64], sizes = [4, 64], strides = [1, 1]} : vector<4x192xf32> to vector<4x64xf32>
    %203 = vector.extract_strided_slice %198 {offsets = [0, 128], sizes = [4, 64], strides = [1, 1]} : vector<4x192xf32> to vector<4x64xf32>
    %204 = arith.mulf %202, %190 : vector<4x64xf32>
    %205 = arith.mulf %201, %200 : vector<4x64xf32>
    %206 = arith.addf %204, %205 : vector<4x64xf32>
    %207 = math.tanh %206 : vector<4x64xf32>
    %208 = arith.mulf %203, %207 : vector<4x64xf32>
    %cst_38 = arith.constant dense<0.000000e+00> : vector<4x256xf32>
    %209 = tpu.matmul %208, %188, %cst_38 {dimension_numbers = #tpu.dot_dimension_numbers<[1], [0], [0], [1], [0, 0, 1, 1], [], []>} : vector<4x64xf32>, vector<64x256xf32>, vector<4x256xf32> -> vector<4x256xf32>
    %210 = arith.addf %121, %209 : vector<4x256xf32>
    %211 = vector.extract_strided_slice %210 {offsets = [0, 0], sizes = [4, 192], strides = [1, 1]} : vector<4x256xf32> to vector<4x192xf32>
    %212 = arith.negf %211 : vector<4x192xf32>
    %213 = math.exp %212 : vector<4x192xf32>
    %cst_39 = arith.constant 1.000000e+00 : f32
    %214 = vector.broadcast %cst_39 : f32 to vector<4x192xf32>
    %215 = arith.addf %214, %213 : vector<4x192xf32>
    %216 = arith.divf %214, %215 : vector<4x192xf32>
    %217 = vector.extract_strided_slice %210 {offsets = [0, 192], sizes = [4, 64], strides = [1, 1]} : vector<4x256xf32> to vector<4x64xf32>
    %218 = math.tanh %217 : vector<4x64xf32>
    %219 = vector.extract_strided_slice %216 {offsets = [0, 0], sizes = [4, 64], strides = [1, 1]} : vector<4x192xf32> to vector<4x64xf32>
    %220 = vector.extract_strided_slice %216 {offsets = [0, 64], sizes = [4, 64], strides = [1, 1]} : vector<4x192xf32> to vector<4x64xf32>
    %221 = vector.extract_strided_slice %216 {offsets = [0, 128], sizes = [4, 64], strides = [1, 1]} : vector<4x192xf32> to vector<4x64xf32>
    %222 = arith.mulf %220, %206 : vector<4x64xf32>
    %223 = arith.mulf %219, %218 : vector<4x64xf32>
    %224 = arith.addf %222, %223 : vector<4x64xf32>
    %225 = math.tanh %224 : vector<4x64xf32>
    %226 = arith.mulf %221, %225 : vector<4x64xf32>
    %cst_40 = arith.constant dense<0.000000e+00> : vector<4x256xf32>
    %227 = tpu.matmul %226, %188, %cst_40 {dimension_numbers = #tpu.dot_dimension_numbers<[1], [0], [0], [1], [0, 0, 1, 1], [], []>} : vector<4x64xf32>, vector<64x256xf32>, vector<4x256xf32> -> vector<4x256xf32>
    %228 = arith.addf %132, %227 : vector<4x256xf32>
    %229 = vector.extract_strided_slice %228 {offsets = [0, 0], sizes = [4, 192], strides = [1, 1]} : vector<4x256xf32> to vector<4x192xf32>
    %230 = arith.negf %229 : vector<4x192xf32>
    %231 = math.exp %230 : vector<4x192xf32>
    %cst_41 = arith.constant 1.000000e+00 : f32
    %232 = vector.broadcast %cst_41 : f32 to vector<4x192xf32>
    %233 = arith.addf %232, %231 : vector<4x192xf32>
    %234 = arith.divf %232, %233 : vector<4x192xf32>
    %235 = vector.extract_strided_slice %228 {offsets = [0, 192], sizes = [4, 64], strides = [1, 1]} : vector<4x256xf32> to vector<4x64xf32>
    %236 = math.tanh %235 : vector<4x64xf32>
    %237 = vector.extract_strided_slice %234 {offsets = [0, 0], sizes = [4, 64], strides = [1, 1]} : vector<4x192xf32> to vector<4x64xf32>
    %238 = vector.extract_strided_slice %234 {offsets = [0, 64], sizes = [4, 64], strides = [1, 1]} : vector<4x192xf32> to vector<4x64xf32>
    %239 = vector.extract_strided_slice %234 {offsets = [0, 128], sizes = [4, 64], strides = [1, 1]} : vector<4x192xf32> to vector<4x64xf32>
    %240 = arith.mulf %238, %224 : vector<4x64xf32>
    %241 = arith.mulf %237, %236 : vector<4x64xf32>
    %242 = arith.addf %240, %241 : vector<4x64xf32>
    %243 = math.tanh %242 : vector<4x64xf32>
    %244 = arith.mulf %239, %243 : vector<4x64xf32>
    %cst_42 = arith.constant dense<0.000000e+00> : vector<4x256xf32>
    %245 = tpu.matmul %244, %188, %cst_42 {dimension_numbers = #tpu.dot_dimension_numbers<[1], [0], [0], [1], [0, 0, 1, 1], [], []>} : vector<4x64xf32>, vector<64x256xf32>, vector<4x256xf32> -> vector<4x256xf32>
    %246 = arith.addf %143, %245 : vector<4x256xf32>
    %247 = vector.extract_strided_slice %246 {offsets = [0, 0], sizes = [4, 192], strides = [1, 1]} : vector<4x256xf32> to vector<4x192xf32>
    %248 = arith.negf %247 : vector<4x192xf32>
    %249 = math.exp %248 : vector<4x192xf32>
    %cst_43 = arith.constant 1.000000e+00 : f32
    %250 = vector.broadcast %cst_43 : f32 to vector<4x192xf32>
    %251 = arith.addf %250, %249 : vector<4x192xf32>
    %252 = arith.divf %250, %251 : vector<4x192xf32>
    %253 = vector.extract_strided_slice %246 {offsets = [0, 192], sizes = [4, 64], strides = [1, 1]} : vector<4x256xf32> to vector<4x64xf32>
    %254 = math.tanh %253 : vector<4x64xf32>
    %255 = vector.extract_strided_slice %252 {offsets = [0, 0], sizes = [4, 64], strides = [1, 1]} : vector<4x192xf32> to vector<4x64xf32>
    %256 = vector.extract_strided_slice %252 {offsets = [0, 64], sizes = [4, 64], strides = [1, 1]} : vector<4x192xf32> to vector<4x64xf32>
    %257 = vector.extract_strided_slice %252 {offsets = [0, 128], sizes = [4, 64], strides = [1, 1]} : vector<4x192xf32> to vector<4x64xf32>
    %258 = arith.mulf %256, %242 : vector<4x64xf32>
    %259 = arith.mulf %255, %254 : vector<4x64xf32>
    %260 = arith.addf %258, %259 : vector<4x64xf32>
    %261 = math.tanh %260 : vector<4x64xf32>
    %262 = arith.mulf %257, %261 : vector<4x64xf32>
    %cst_44 = arith.constant dense<0.000000e+00> : vector<4x256xf32>
    %263 = tpu.matmul %262, %188, %cst_44 {dimension_numbers = #tpu.dot_dimension_numbers<[1], [0], [0], [1], [0, 0, 1, 1], [], []>} : vector<4x64xf32>, vector<64x256xf32>, vector<4x256xf32> -> vector<4x256xf32>
    %264 = arith.addf %154, %263 : vector<4x256xf32>
    %265 = vector.extract_strided_slice %264 {offsets = [0, 0], sizes = [4, 192], strides = [1, 1]} : vector<4x256xf32> to vector<4x192xf32>
    %266 = arith.negf %265 : vector<4x192xf32>
    %267 = math.exp %266 : vector<4x192xf32>
    %cst_45 = arith.constant 1.000000e+00 : f32
    %268 = vector.broadcast %cst_45 : f32 to vector<4x192xf32>
    %269 = arith.addf %268, %267 : vector<4x192xf32>
    %270 = arith.divf %268, %269 : vector<4x192xf32>
    %271 = vector.extract_strided_slice %264 {offsets = [0, 192], sizes = [4, 64], strides = [1, 1]} : vector<4x256xf32> to vector<4x64xf32>
    %272 = math.tanh %271 : vector<4x64xf32>
    %273 = vector.extract_strided_slice %270 {offsets = [0, 0], sizes = [4, 64], strides = [1, 1]} : vector<4x192xf32> to vector<4x64xf32>
    %274 = vector.extract_strided_slice %270 {offsets = [0, 64], sizes = [4, 64], strides = [1, 1]} : vector<4x192xf32> to vector<4x64xf32>
    %275 = vector.extract_strided_slice %270 {offsets = [0, 128], sizes = [4, 64], strides = [1, 1]} : vector<4x192xf32> to vector<4x64xf32>
    %276 = arith.mulf %274, %260 : vector<4x64xf32>
    %277 = arith.mulf %273, %272 : vector<4x64xf32>
    %278 = arith.addf %276, %277 : vector<4x64xf32>
    %279 = math.tanh %278 : vector<4x64xf32>
    %280 = arith.mulf %275, %279 : vector<4x64xf32>
    %cst_46 = arith.constant dense<0.000000e+00> : vector<4x256xf32>
    %281 = tpu.matmul %280, %188, %cst_46 {dimension_numbers = #tpu.dot_dimension_numbers<[1], [0], [0], [1], [0, 0, 1, 1], [], []>} : vector<4x64xf32>, vector<64x256xf32>, vector<4x256xf32> -> vector<4x256xf32>
    %282 = arith.addf %165, %281 : vector<4x256xf32>
    %283 = vector.extract_strided_slice %282 {offsets = [0, 0], sizes = [4, 192], strides = [1, 1]} : vector<4x256xf32> to vector<4x192xf32>
    %284 = arith.negf %283 : vector<4x192xf32>
    %285 = math.exp %284 : vector<4x192xf32>
    %cst_47 = arith.constant 1.000000e+00 : f32
    %286 = vector.broadcast %cst_47 : f32 to vector<4x192xf32>
    %287 = arith.addf %286, %285 : vector<4x192xf32>
    %288 = arith.divf %286, %287 : vector<4x192xf32>
    %289 = vector.extract_strided_slice %282 {offsets = [0, 192], sizes = [4, 64], strides = [1, 1]} : vector<4x256xf32> to vector<4x64xf32>
    %290 = math.tanh %289 : vector<4x64xf32>
    %291 = vector.extract_strided_slice %288 {offsets = [0, 0], sizes = [4, 64], strides = [1, 1]} : vector<4x192xf32> to vector<4x64xf32>
    %292 = vector.extract_strided_slice %288 {offsets = [0, 64], sizes = [4, 64], strides = [1, 1]} : vector<4x192xf32> to vector<4x64xf32>
    %293 = vector.extract_strided_slice %288 {offsets = [0, 128], sizes = [4, 64], strides = [1, 1]} : vector<4x192xf32> to vector<4x64xf32>
    %294 = arith.mulf %292, %278 : vector<4x64xf32>
    %295 = arith.mulf %291, %290 : vector<4x64xf32>
    %296 = arith.addf %294, %295 : vector<4x64xf32>
    %297 = math.tanh %296 : vector<4x64xf32>
    %298 = arith.mulf %293, %297 : vector<4x64xf32>
    %cst_48 = arith.constant dense<0.000000e+00> : vector<4x256xf32>
    %299 = tpu.matmul %298, %188, %cst_48 {dimension_numbers = #tpu.dot_dimension_numbers<[1], [0], [0], [1], [0, 0, 1, 1], [], []>} : vector<4x64xf32>, vector<64x256xf32>, vector<4x256xf32> -> vector<4x256xf32>
    %300 = arith.addf %176, %299 : vector<4x256xf32>
    %301 = vector.extract_strided_slice %300 {offsets = [0, 0], sizes = [4, 192], strides = [1, 1]} : vector<4x256xf32> to vector<4x192xf32>
    %302 = arith.negf %301 : vector<4x192xf32>
    %303 = math.exp %302 : vector<4x192xf32>
    %cst_49 = arith.constant 1.000000e+00 : f32
    %304 = vector.broadcast %cst_49 : f32 to vector<4x192xf32>
    %305 = arith.addf %304, %303 : vector<4x192xf32>
    %306 = arith.divf %304, %305 : vector<4x192xf32>
    %307 = vector.extract_strided_slice %300 {offsets = [0, 192], sizes = [4, 64], strides = [1, 1]} : vector<4x256xf32> to vector<4x64xf32>
    %308 = math.tanh %307 : vector<4x64xf32>
    %309 = vector.extract_strided_slice %306 {offsets = [0, 0], sizes = [4, 64], strides = [1, 1]} : vector<4x192xf32> to vector<4x64xf32>
    %310 = vector.extract_strided_slice %306 {offsets = [0, 64], sizes = [4, 64], strides = [1, 1]} : vector<4x192xf32> to vector<4x64xf32>
    %311 = vector.extract_strided_slice %306 {offsets = [0, 128], sizes = [4, 64], strides = [1, 1]} : vector<4x192xf32> to vector<4x64xf32>
    %312 = arith.mulf %310, %296 : vector<4x64xf32>
    %313 = arith.mulf %309, %308 : vector<4x64xf32>
    %314 = arith.addf %312, %313 : vector<4x64xf32>
    %315 = math.tanh %314 : vector<4x64xf32>
    %316 = arith.mulf %311, %315 : vector<4x64xf32>
    %cst_50 = arith.constant dense<0.000000e+00> : vector<4x256xf32>
    %317 = tpu.matmul %316, %188, %cst_50 {dimension_numbers = #tpu.dot_dimension_numbers<[1], [0], [0], [1], [0, 0, 1, 1], [], []>} : vector<4x64xf32>, vector<64x256xf32>, vector<4x256xf32> -> vector<4x256xf32>
    %318 = arith.addf %187, %317 : vector<4x256xf32>
    %319 = vector.extract_strided_slice %318 {offsets = [0, 0], sizes = [4, 192], strides = [1, 1]} : vector<4x256xf32> to vector<4x192xf32>
    %320 = arith.negf %319 : vector<4x192xf32>
    %321 = math.exp %320 : vector<4x192xf32>
    %cst_51 = arith.constant 1.000000e+00 : f32
    %322 = vector.broadcast %cst_51 : f32 to vector<4x192xf32>
    %323 = arith.addf %322, %321 : vector<4x192xf32>
    %324 = arith.divf %322, %323 : vector<4x192xf32>
    %325 = vector.extract_strided_slice %318 {offsets = [0, 192], sizes = [4, 64], strides = [1, 1]} : vector<4x256xf32> to vector<4x64xf32>
    %326 = math.tanh %325 : vector<4x64xf32>
    %327 = vector.extract_strided_slice %324 {offsets = [0, 0], sizes = [4, 64], strides = [1, 1]} : vector<4x192xf32> to vector<4x64xf32>
    %328 = vector.extract_strided_slice %324 {offsets = [0, 64], sizes = [4, 64], strides = [1, 1]} : vector<4x192xf32> to vector<4x64xf32>
    %329 = vector.extract_strided_slice %324 {offsets = [0, 128], sizes = [4, 64], strides = [1, 1]} : vector<4x192xf32> to vector<4x64xf32>
    %330 = arith.mulf %328, %314 : vector<4x64xf32>
    %331 = arith.mulf %327, %326 : vector<4x64xf32>
    %332 = arith.addf %330, %331 : vector<4x64xf32>
    %333 = math.tanh %332 : vector<4x64xf32>
    %334 = arith.mulf %329, %333 : vector<4x64xf32>
    %335 = vector.extract_strided_slice %208 {offsets = [0, 0], sizes = [4, 32], strides = [1, 1]} : vector<4x64xf32> to vector<4x32xf32>
    %336 = vector.extract_strided_slice %334 {offsets = [0, 32], sizes = [4, 32], strides = [1, 1]} : vector<4x64xf32> to vector<4x32xf32>
    %337 = tpu.concatenate %335, %336 in 1 : vector<4x32xf32>, vector<4x32xf32> -> vector<4x64xf32>
    %338 = vector.extract_strided_slice %226 {offsets = [0, 0], sizes = [4, 32], strides = [1, 1]} : vector<4x64xf32> to vector<4x32xf32>
    %339 = vector.extract_strided_slice %316 {offsets = [0, 32], sizes = [4, 32], strides = [1, 1]} : vector<4x64xf32> to vector<4x32xf32>
    %340 = tpu.concatenate %338, %339 in 1 : vector<4x32xf32>, vector<4x32xf32> -> vector<4x64xf32>
    %341 = vector.extract_strided_slice %244 {offsets = [0, 0], sizes = [4, 32], strides = [1, 1]} : vector<4x64xf32> to vector<4x32xf32>
    %342 = vector.extract_strided_slice %298 {offsets = [0, 32], sizes = [4, 32], strides = [1, 1]} : vector<4x64xf32> to vector<4x32xf32>
    %343 = tpu.concatenate %341, %342 in 1 : vector<4x32xf32>, vector<4x32xf32> -> vector<4x64xf32>
    %344 = vector.extract_strided_slice %262 {offsets = [0, 0], sizes = [4, 32], strides = [1, 1]} : vector<4x64xf32> to vector<4x32xf32>
    %345 = vector.extract_strided_slice %280 {offsets = [0, 32], sizes = [4, 32], strides = [1, 1]} : vector<4x64xf32> to vector<4x32xf32>
    %346 = tpu.concatenate %344, %345 in 1 : vector<4x32xf32>, vector<4x32xf32> -> vector<4x64xf32>
    %347 = vector.extract_strided_slice %280 {offsets = [0, 0], sizes = [4, 32], strides = [1, 1]} : vector<4x64xf32> to vector<4x32xf32>
    %348 = vector.extract_strided_slice %262 {offsets = [0, 32], sizes = [4, 32], strides = [1, 1]} : vector<4x64xf32> to vector<4x32xf32>
    %349 = tpu.concatenate %347, %348 in 1 : vector<4x32xf32>, vector<4x32xf32> -> vector<4x64xf32>
    %350 = vector.extract_strided_slice %298 {offsets = [0, 0], sizes = [4, 32], strides = [1, 1]} : vector<4x64xf32> to vector<4x32xf32>
    %351 = vector.extract_strided_slice %244 {offsets = [0, 32], sizes = [4, 32], strides = [1, 1]} : vector<4x64xf32> to vector<4x32xf32>
    %352 = tpu.concatenate %350, %351 in 1 : vector<4x32xf32>, vector<4x32xf32> -> vector<4x64xf32>
    %353 = vector.extract_strided_slice %316 {offsets = [0, 0], sizes = [4, 32], strides = [1, 1]} : vector<4x64xf32> to vector<4x32xf32>
    %354 = vector.extract_strided_slice %226 {offsets = [0, 32], sizes = [4, 32], strides = [1, 1]} : vector<4x64xf32> to vector<4x32xf32>
    %355 = tpu.concatenate %353, %354 in 1 : vector<4x32xf32>, vector<4x32xf32> -> vector<4x64xf32>
    %356 = vector.extract_strided_slice %334 {offsets = [0, 0], sizes = [4, 32], strides = [1, 1]} : vector<4x64xf32> to vector<4x32xf32>
    %357 = vector.extract_strided_slice %208 {offsets = [0, 32], sizes = [4, 32], strides = [1, 1]} : vector<4x64xf32> to vector<4x32xf32>
    %358 = tpu.concatenate %356, %357 in 1 : vector<4x32xf32>, vector<4x32xf32> -> vector<4x64xf32>
    %359 = vector.extract_strided_slice %337 {offsets = [0, 0], sizes = [1, 64], strides = [1, 1]} : vector<4x64xf32> to vector<1x64xf32>
    %360 = vector.extract_strided_slice %340 {offsets = [0, 0], sizes = [1, 64], strides = [1, 1]} : vector<4x64xf32> to vector<1x64xf32>
    %361 = vector.extract_strided_slice %343 {offsets = [0, 0], sizes = [1, 64], strides = [1, 1]} : vector<4x64xf32> to vector<1x64xf32>
    %362 = vector.extract_strided_slice %346 {offsets = [0, 0], sizes = [1, 64], strides = [1, 1]} : vector<4x64xf32> to vector<1x64xf32>
    %363 = vector.extract_strided_slice %349 {offsets = [0, 0], sizes = [1, 64], strides = [1, 1]} : vector<4x64xf32> to vector<1x64xf32>
    %364 = vector.extract_strided_slice %352 {offsets = [0, 0], sizes = [1, 64], strides = [1, 1]} : vector<4x64xf32> to vector<1x64xf32>
    %365 = vector.extract_strided_slice %355 {offsets = [0, 0], sizes = [1, 64], strides = [1, 1]} : vector<4x64xf32> to vector<1x64xf32>
    %366 = vector.extract_strided_slice %358 {offsets = [0, 0], sizes = [1, 64], strides = [1, 1]} : vector<4x64xf32> to vector<1x64xf32>
    %367 = tpu.concatenate %359, %360, %361, %362, %363, %364, %365, %366 in 0 : vector<1x64xf32>, vector<1x64xf32>, vector<1x64xf32>, vector<1x64xf32>, vector<1x64xf32>, vector<1x64xf32>, vector<1x64xf32>, vector<1x64xf32> -> vector<8x64xf32>
    %368 = vector.extract_strided_slice %337 {offsets = [2, 0], sizes = [1, 64], strides = [1, 1]} : vector<4x64xf32> to vector<1x64xf32>
    %369 = vector.extract_strided_slice %340 {offsets = [2, 0], sizes = [1, 64], strides = [1, 1]} : vector<4x64xf32> to vector<1x64xf32>
    %370 = vector.extract_strided_slice %343 {offsets = [2, 0], sizes = [1, 64], strides = [1, 1]} : vector<4x64xf32> to vector<1x64xf32>
    %371 = vector.extract_strided_slice %346 {offsets = [2, 0], sizes = [1, 64], strides = [1, 1]} : vector<4x64xf32> to vector<1x64xf32>
    %372 = vector.extract_strided_slice %349 {offsets = [2, 0], sizes = [1, 64], strides = [1, 1]} : vector<4x64xf32> to vector<1x64xf32>
    %373 = vector.extract_strided_slice %352 {offsets = [2, 0], sizes = [1, 64], strides = [1, 1]} : vector<4x64xf32> to vector<1x64xf32>
    %374 = vector.extract_strided_slice %355 {offsets = [2, 0], sizes = [1, 64], strides = [1, 1]} : vector<4x64xf32> to vector<1x64xf32>
    %375 = vector.extract_strided_slice %358 {offsets = [2, 0], sizes = [1, 64], strides = [1, 1]} : vector<4x64xf32> to vector<1x64xf32>
    %376 = tpu.concatenate %368, %369, %370, %371, %372, %373, %374, %375 in 0 : vector<1x64xf32>, vector<1x64xf32>, vector<1x64xf32>, vector<1x64xf32>, vector<1x64xf32>, vector<1x64xf32>, vector<1x64xf32>, vector<1x64xf32> -> vector<8x64xf32>
    %cst_52 = arith.constant dense<0.000000e+00> : vector<8x8xf32>
    %377 = tpu.matmul %367, %376, %cst_52 {dimension_numbers = #tpu.dot_dimension_numbers<[1], [1], [0], [0], [0, 0, 1, 0], [], []>} : vector<8x64xf32>, vector<8x64xf32>, vector<8x8xf32> -> vector<8x8xf32>
    %378 = vector.extract_strided_slice %337 {offsets = [1, 0], sizes = [1, 64], strides = [1, 1]} : vector<4x64xf32> to vector<1x64xf32>
    %379 = vector.extract_strided_slice %340 {offsets = [1, 0], sizes = [1, 64], strides = [1, 1]} : vector<4x64xf32> to vector<1x64xf32>
    %380 = vector.extract_strided_slice %343 {offsets = [1, 0], sizes = [1, 64], strides = [1, 1]} : vector<4x64xf32> to vector<1x64xf32>
    %381 = vector.extract_strided_slice %346 {offsets = [1, 0], sizes = [1, 64], strides = [1, 1]} : vector<4x64xf32> to vector<1x64xf32>
    %382 = vector.extract_strided_slice %349 {offsets = [1, 0], sizes = [1, 64], strides = [1, 1]} : vector<4x64xf32> to vector<1x64xf32>
    %383 = vector.extract_strided_slice %352 {offsets = [1, 0], sizes = [1, 64], strides = [1, 1]} : vector<4x64xf32> to vector<1x64xf32>
    %384 = vector.extract_strided_slice %355 {offsets = [1, 0], sizes = [1, 64], strides = [1, 1]} : vector<4x64xf32> to vector<1x64xf32>
    %385 = vector.extract_strided_slice %358 {offsets = [1, 0], sizes = [1, 64], strides = [1, 1]} : vector<4x64xf32> to vector<1x64xf32>
    %386 = tpu.concatenate %378, %379, %380, %381, %382, %383, %384, %385 in 0 : vector<1x64xf32>, vector<1x64xf32>, vector<1x64xf32>, vector<1x64xf32>, vector<1x64xf32>, vector<1x64xf32>, vector<1x64xf32>, vector<1x64xf32> -> vector<8x64xf32>
    %387 = vector.extract_strided_slice %337 {offsets = [3, 0], sizes = [1, 64], strides = [1, 1]} : vector<4x64xf32> to vector<1x64xf32>
    %388 = vector.extract_strided_slice %340 {offsets = [3, 0], sizes = [1, 64], strides = [1, 1]} : vector<4x64xf32> to vector<1x64xf32>
    %389 = vector.extract_strided_slice %343 {offsets = [3, 0], sizes = [1, 64], strides = [1, 1]} : vector<4x64xf32> to vector<1x64xf32>
    %390 = vector.extract_strided_slice %346 {offsets = [3, 0], sizes = [1, 64], strides = [1, 1]} : vector<4x64xf32> to vector<1x64xf32>
    %391 = vector.extract_strided_slice %349 {offsets = [3, 0], sizes = [1, 64], strides = [1, 1]} : vector<4x64xf32> to vector<1x64xf32>
    %392 = vector.extract_strided_slice %352 {offsets = [3, 0], sizes = [1, 64], strides = [1, 1]} : vector<4x64xf32> to vector<1x64xf32>
    %393 = vector.extract_strided_slice %355 {offsets = [3, 0], sizes = [1, 64], strides = [1, 1]} : vector<4x64xf32> to vector<1x64xf32>
    %394 = vector.extract_strided_slice %358 {offsets = [3, 0], sizes = [1, 64], strides = [1, 1]} : vector<4x64xf32> to vector<1x64xf32>
    %395 = tpu.concatenate %387, %388, %389, %390, %391, %392, %393, %394 in 0 : vector<1x64xf32>, vector<1x64xf32>, vector<1x64xf32>, vector<1x64xf32>, vector<1x64xf32>, vector<1x64xf32>, vector<1x64xf32>, vector<1x64xf32> -> vector<8x64xf32>
    %cst_53 = arith.constant dense<0.000000e+00> : vector<8x8xf32>
    %396 = tpu.matmul %386, %395, %cst_53 {dimension_numbers = #tpu.dot_dimension_numbers<[1], [1], [0], [0], [0, 0, 1, 0], [], []>} : vector<8x64xf32>, vector<8x64xf32>, vector<8x8xf32> -> vector<8x8xf32>
    %397 = vector.shape_cast %377 : vector<8x8xf32> to vector<1x8x8xf32>
    %398 = vector.shape_cast %396 : vector<8x8xf32> to vector<1x8x8xf32>
    %399 = tpu.concatenate %397, %398 in 0 : vector<1x8x8xf32>, vector<1x8x8xf32> -> vector<2x8x8xf32>
    %c0_54 = arith.constant 0 : index
    %c0_55 = arith.constant 0 : index
    %c0_56 = arith.constant 0 : index
    %400 = vector.load %arg11[%c0_54, %c0_55, %c0_56] : memref<2x8x8xf32, #tpu.memory_space<vmem>>, vector<2x8x8xf32>
    tpu.vector_store %arg11[%c0_54, %c0_55, %c0_56], %399 {strides = array<i32>} : memref<2x8x8xf32, #tpu.memory_space<vmem>>, vector<2x8x8xf32>,
    return
  }
}

</mosaic_0001>

<llo_original>
// kernel: cat_bilstm_forward.1
$region0: #{cat_bilstm_forward.1}
  #allocation0 [shape = 'u32[]', space=smem, size = 0x4, offset = 0x4, fixed_abs, tag = 'smem constant byte address 0x4 - core index']
  #allocation1 [shape = 'u32[72,128]{1,0:T(1,128)}', space=vmem, size = 0x9000, scoped, tag = 'internal scratch']
  %s0 = inlined_call_operand.vmem [shape: f32[16,32], index: 0, kind: input, shape index: {}]
  %s1 = inlined_call_operand.vmem [shape: f32[16,32], index: 1, kind: input, shape index: {}]
  %s2 = inlined_call_operand.vmem [shape: f32[32,96], index: 2, kind: input, shape index: {}]
  %s3 = inlined_call_operand.vmem [shape: f32[1,96], index: 3, kind: input, shape index: {}]
  %s4 = inlined_call_operand.vmem [shape: f32[32,96], index: 4, kind: input, shape index: {}]
  %s5 = inlined_call_operand.vmem [shape: f32[1,96], index: 5, kind: input, shape index: {}]
  %s6 = inlined_call_operand.vmem [shape: f32[32,32], index: 6, kind: input, shape index: {}]
  %s7 = inlined_call_operand.vmem [shape: f32[1,32], index: 7, kind: input, shape index: {}]
  %s8 = inlined_call_operand.vmem [shape: f32[32,256], index: 8, kind: input, shape index: {}]
  %s9 = inlined_call_operand.vmem [shape: f32[1,256], index: 9, kind: input, shape index: {}]
  %s10 = inlined_call_operand.vmem [shape: f32[64,256], index: 10, kind: input, shape index: {}]
  %s11 = inlined_call_operand.hbm [shape: f32[2,8,8], index: 11, kind: output, shape index: {}]
  %s12 = sld [smem:[#allocation0]]
  $region54: #{cat_bilstm_forward.1} parent=0
    _
  %s14 = ssub.s32 1, %s12
  %s15 = scalar_select 0, %s14, %s12
  $region1: #{cat_bilstm_forward.1} parent=0
    #allocation2 [shape = 'u8[8192]{0}', space=vmem, size = 0x2000, scoped, tag = 'output window, operand 0, single buffered']
    #allocation3 [shape = 's32[1]{0}', space=sflag, size = 0x4, scoped, tag = 'scoped memory for cat_bilstm_forward.1']
    %16 = vsyncpa [#allocation3], 0
    // Predicated region
    $region2: #{cat_bilstm_forward.1} parent=1 // pred_check
      _
    $region3: #{cat_bilstm_forward.1} parent=1 // pred_check_branch
      %18 = sbr.rel (0) target = $region5
    $region4: #{cat_bilstm_forward.1} parent=1 // pred_region
      _
    $region5: #{cat_bilstm_forward.1} parent=1 // pred_fallthru
      _
    // Predicated region
    $region6: #{cat_bilstm_forward.1} parent=1 // pred_check
      _
    $region7: #{cat_bilstm_forward.1} parent=1 // pred_check_branch
      %20 = sbr.rel (0) target = $region9
    $region8: #{cat_bilstm_forward.1} parent=1 // pred_region
      _
    $region9: #{cat_bilstm_forward.1} parent=1 // pred_fallthru
      _
    // Predicated region
    $region10: #{cat_bilstm_forward.1} parent=1 // pred_check
      _
    $region11: #{cat_bilstm_forward.1} parent=1 // pred_check_branch
      %22 = sbr.rel (0) target = $region13
    $region12: #{cat_bilstm_forward.1} parent=1 // pred_region
      _
    $region13: #{cat_bilstm_forward.1} parent=1 // pred_fallthru
      _
    // Predicated region
    $region14: #{cat_bilstm_forward.1} parent=1 // pred_check
      _
    $region15: #{cat_bilstm_forward.1} parent=1 // pred_check_branch
      %24 = sbr.rel (0) target = $region17
    $region16: #{cat_bilstm_forward.1} parent=1 // pred_region
      _
    $region17: #{cat_bilstm_forward.1} parent=1 // pred_fallthru
      _
    // Predicated region
    $region18: #{cat_bilstm_forward.1} parent=1 // pred_check
      _
    $region19: #{cat_bilstm_forward.1} parent=1 // pred_check_branch
      %26 = sbr.rel (0) target = $region21
    $region20: #{cat_bilstm_forward.1} parent=1 // pred_region
      _
    $region21: #{cat_bilstm_forward.1} parent=1 // pred_fallthru
      _
    // Predicated region
    $region22: #{cat_bilstm_forward.1} parent=1 // pred_check
      _
    $region23: #{cat_bilstm_forward.1} parent=1 // pred_check_branch
      %28 = sbr.rel (0) target = $region25
    $region24: #{cat_bilstm_forward.1} parent=1 // pred_region
      _
    $region25: #{cat_bilstm_forward.1} parent=1 // pred_fallthru
      _
    // Predicated region
    $region26: #{cat_bilstm_forward.1} parent=1 // pred_check
      _
    $region27: #{cat_bilstm_forward.1} parent=1 // pred_check_branch
      %30 = sbr.rel (0) target = $region29
    $region28: #{cat_bilstm_forward.1} parent=1 // pred_region
      _
    $region29: #{cat_bilstm_forward.1} parent=1 // pred_fallthru
      _
    // Predicated region
    $region30: #{cat_bilstm_forward.1} parent=1 // pred_check
      _
    $region31: #{cat_bilstm_forward.1} parent=1 // pred_check_branch
      %32 = sbr.rel (0) target = $region33
    $region32: #{cat_bilstm_forward.1} parent=1 // pred_region
      _
    $region33: #{cat_bilstm_forward.1} parent=1 // pred_fallthru
      _
    // Predicated region
    $region34: #{cat_bilstm_forward.1} parent=1 // pred_check
      _
    $region35: #{cat_bilstm_forward.1} parent=1 // pred_check_branch
      %34 = sbr.rel (0) target = $region37
    $region36: #{cat_bilstm_forward.1} parent=1 // pred_region
      _
    $region37: #{cat_bilstm_forward.1} parent=1 // pred_fallthru
      _
    // Predicated region
    $region38: #{cat_bilstm_forward.1} parent=1 // pred_check
      _
    $region39: #{cat_bilstm_forward.1} parent=1 // pred_check_branch
      %36 = sbr.rel (0) target = $region41
    $region40: #{cat_bilstm_forward.1} parent=1 // pred_region
      _
    $region41: #{cat_bilstm_forward.1} parent=1 // pred_fallthru
      _
    // Predicated region
    $region42: #{cat_bilstm_forward.1} parent=1 // pred_check
      _
    $region43: #{cat_bilstm_forward.1} parent=1 // pred_check_branch
      %38 = sbr.rel (0) target = $region45
    $region44: #{cat_bilstm_forward.1} parent=1 // pred_region
      _
    $region45: #{cat_bilstm_forward.1} parent=1 // pred_fallthru
      _
    %v39 = vld [vmem:[%s0] sm:$0xff]
    %v40 = vld [vmem:[%s0 + $0x8] sm:$0xff]
    %v41 = vld [vmem:[%s1] sm:$0xff]
    %v42 = vld [vmem:[%s1 + $0x8] sm:$0xff]
    %v43 = vld [vmem:[%s2] sm:$0xff]
    %v44 = vld [vmem:[%s2 + $0x8] sm:$0xff]
    %v45 = vld [vmem:[%s2 + $0x10] sm:$0xff]
    %v46 = vld [vmem:[%s2 + $0x18] sm:$0xff]
    %v47 = vld [vmem:[%s3] sm:$0x1]
    %v49 = vperm.slane %v47, 0
    %vm51 = vcmask 261120
    %v53 = vsel %vm51, %v39, 0
    %v56 = vsel %vm51, %v40, 0
    %58 = vmatpush.msra.mxu0 0.0
    %59 = vmatpush.msra.mxu0 0.0
    %60 = vmatpush.msra.mxu0 0.0
    %61 = vmatpush.msra.mxu0 0.0
    %62 = vmatpush.msra.mxu0 0.0
    %63 = vmatpush.msra.mxu0 0.0
    %64 = vmatpush.msra.mxu0 0.0
    %65 = vmatpush.msra.mxu0 0.0
    %66 = vmatpush.msra.mxu0 0.0
    %67 = vmatpush.msra.mxu0 0.0
    %68 = vmatpush.msra.mxu0 0.0
    %69 = vmatpush.msra.mxu0 0.0
    %70 = vmatpush.msra.mxu0 %v46
    %71 = vmatpush.msra.mxu0 %v45
    %72 = vmatpush.msra.mxu0 %v44
    %73 = vmatpush.msra.mxu0 %v43
    %74 = vmatmul.f32.gmra.mxu0 %v53
    %v75 = vpop.f32.mrf.mxu0
    %v76 = vadd.f32 %v49, %v75
    %77 = vmatmul.f32.gmra.mxu0 %v56
    %v78 = vpop.f32.mrf.mxu0
    %v79 = vadd.f32 %v49, %v78
    %80 = vdwg.mxu0
    %v81 = vld [vmem:[%s4] sm:$0xff]
    %v82 = vld [vmem:[%s4 + $0x8] sm:$0xff]
    %v83 = vld [vmem:[%s4 + $0x10] sm:$0xff]
    %v84 = vld [vmem:[%s4 + $0x18] sm:$0xff]
    %v85 = vld [vmem:[%s5] sm:$0x1]
    %v87 = vperm.slane %v85, 0
    %v90 = vsel %vm51, %v41, 0
    %v93 = vsel %vm51, %v42, 0
    %95 = vmatpush.msra.mxu0 0.0
    %96 = vmatpush.msra.mxu0 0.0
    %97 = vmatpush.msra.mxu0 0.0
    %98 = vmatpush.msra.mxu0 0.0
    %99 = vmatpush.msra.mxu0 0.0
    %100 = vmatpush.msra.mxu0 0.0
    %101 = vmatpush.msra.mxu0 0.0
    %102 = vmatpush.msra.mxu0 0.0
    %103 = vmatpush.msra.mxu0 0.0
    %104 = vmatpush.msra.mxu0 0.0
    %105 = vmatpush.msra.mxu0 0.0
    %106 = vmatpush.msra.mxu0 0.0
    %107 = vmatpush.msra.mxu0 %v84
    %108 = vmatpush.msra.mxu0 %v83
    %109 = vmatpush.msra.mxu0 %v82
    %110 = vmatpush.msra.mxu0 %v81
    %111 = vmatmul.f32.gmra.mxu0 %v90
    %v112 = vpop.f32.mrf.mxu0
    %v113 = vadd.f32 %v87, %v112
    %114 = vmatmul.f32.gmra.mxu0 %v93
    %v115 = vpop.f32.mrf.mxu0
    %v116 = vadd.f32 %v87, %v115
    %117 = vdwg.mxu0
    %119 = vrot.lane.b32.xlu0 %v113, 96
    %v120 = vpop.permute.xlu0 %119
    %v122 = vsel %vm51, %v76, 0
    %v124 = vsel %vm51, %v120, 0
    %126 = vmatpush.xpose.msra.mxu0 0.0
    %127 = vmatpush.xpose.msra.mxu0 0.0
    %128 = vmatpush.xpose.msra.mxu0 0.0
    %129 = vmatpush.xpose.msra.mxu0 0.0
    %130 = vmatpush.xpose.msra.mxu0 0.0
    %131 = vmatpush.xpose.msra.mxu0 0.0
    %132 = vmatpush.xpose.msra.mxu0 0.0
    %133 = vmatpush.xpose.msra.mxu0 0.0
    %134 = vmatpush.xpose.msra.mxu0 0.0
    %135 = vmatpush.xpose.msra.mxu0 0.0
    %136 = vmatpush.xpose.msra.mxu0 0.0
    %137 = vmatpush.xpose.msra.mxu0 0.0
    %138 = vmatpush.xpose.msra.mxu0 0.0
    %139 = vmatpush.xpose.msra.mxu0 0.0
    %140 = vmatpush.xpose.msra.mxu0 0.0
    %141 = vmatpush.xpose.msra.mxu0 %v124
    %142 = vmatmul.f32.gmra.mxu0 %v122
    %v143 = vpop.f32.mrf.mxu0
    %v144 = vadd.f32 0.0, %v143
    %145 = vdwg.mxu0
    %147 = vrot.lane.b32.xlu0 %v116, 96
    %v148 = vpop.permute.xlu0 %147
    %v150 = vsel %vm51, %v79, 0
    %v152 = vsel %vm51, %v148, 0
    %154 = vmatpush.xpose.msra.mxu0 0.0
    %155 = vmatpush.xpose.msra.mxu0 0.0
    %156 = vmatpush.xpose.msra.mxu0 0.0
    %157 = vmatpush.xpose.msra.mxu0 0.0
    %158 = vmatpush.xpose.msra.mxu0 0.0
    %159 = vmatpush.xpose.msra.mxu0 0.0
    %160 = vmatpush.xpose.msra.mxu0 0.0
    %161 = vmatpush.xpose.msra.mxu0 0.0
    %162 = vmatpush.xpose.msra.mxu0 0.0
    %163 = vmatpush.xpose.msra.mxu0 0.0
    %164 = vmatpush.xpose.msra.mxu0 0.0
    %165 = vmatpush.xpose.msra.mxu0 0.0
    %166 = vmatpush.xpose.msra.mxu0 0.0
    %167 = vmatpush.xpose.msra.mxu0 0.0
    %168 = vmatpush.xpose.msra.mxu0 0.0
    %169 = vmatpush.xpose.msra.mxu0 %v152
    %170 = vmatmul.f32.gmra.mxu0 %v150
    %v171 = vpop.f32.mrf.mxu0
    %v172 = vadd.f32 0.0, %v171
    %173 = vdwg.mxu0
    %v174 = vmul.f32 %v144, 0.17677669
    %v175 = vmul.f32 %v172, 0.17677669
    %vm176 = vcmask 64512
    %v177 = vsel %vm176, %v174, -inf
    %178 = vmax.xlane.f32.xlu0 %v177
    %v179 = vpop.xlane.xlu0 %178
    %v180 = vsel %vm176, %v175, -inf
    %181 = vmax.xlane.f32.xlu0 %v180
    %v182 = vpop.xlane.xlu0 %181
    %v183 = vsub.f32 %v174, %v179
    %v184 = vsub.f32 %v175, %v182
    %v185 = vmul.f32 %v183, 1.442695
    %v186 = vpow.pop %v185
    %v187 = vmul.f32 %v184, 1.442695
    %v188 = vpow.pop %v187
    %v189 = vsel %vm176, %v186, 0.0
    %190 = vadd.xlane.f32.xlu0 %v189
    %v191 = vpop.xlane.xlu0 %190
    %v192 = vsel %vm176, %v188, 0.0
    %193 = vadd.xlane.f32.xlu0 %v192
    %v194 = vpop.xlane.xlu0 %193
    %v195 = vrcp.pop %v191
    %v196 = vrcp.pop %v194
    %v197 = vmul.f32 %v186, %v195
    %v198 = vmul.f32 %v188, %v196
    %199 = vrot.lane.b32.xlu0 %v113, 64
    %v200 = vpop.permute.xlu0 %199
    %v203 = vsel %vm176, %v197, 0
    %205 = vmatpush.msra.mxu0 0.0
    %206 = vmatpush.msra.mxu0 0.0
    %207 = vmatpush.msra.mxu0 0.0
    %208 = vmatpush.msra.mxu0 0.0
    %209 = vmatpush.msra.mxu0 0.0
    %210 = vmatpush.msra.mxu0 0.0
    %211 = vmatpush.msra.mxu0 0.0
    %212 = vmatpush.msra.mxu0 0.0
    %213 = vmatpush.msra.mxu0 0.0
    %214 = vmatpush.msra.mxu0 0.0
    %215 = vmatpush.msra.mxu0 0.0
    %216 = vmatpush.msra.mxu0 0.0
    %217 = vmatpush.msra.mxu0 0.0
    %218 = vmatpush.msra.mxu0 0.0
    %219 = vmatpush.msra.mxu0 0.0
    %220 = vmatpush.msra.mxu0 %v200
    %221 = vmatmul.f32.gmra.mxu0 %v203
    %v222 = vpop.f32.mrf.mxu0
    %v223 = vadd.f32 0.0, %v222
    %224 = vdwg.mxu0
    %225 = vrot.lane.b32.xlu0 %v116, 64
    %v226 = vpop.permute.xlu0 %225
    %v229 = vsel %vm176, %v198, 0
    %231 = vmatpush.msra.mxu0 0.0
    %232 = vmatpush.msra.mxu0 0.0
    %233 = vmatpush.msra.mxu0 0.0
    %234 = vmatpush.msra.mxu0 0.0
    %235 = vmatpush.msra.mxu0 0.0
    %236 = vmatpush.msra.mxu0 0.0
    %237 = vmatpush.msra.mxu0 0.0
    %238 = vmatpush.msra.mxu0 0.0
    %239 = vmatpush.msra.mxu0 0.0
    %240 = vmatpush.msra.mxu0 0.0
    %241 = vmatpush.msra.mxu0 0.0
    %242 = vmatpush.msra.mxu0 0.0
    %243 = vmatpush.msra.mxu0 0.0
    %244 = vmatpush.msra.mxu0 0.0
    %245 = vmatpush.msra.mxu0 0.0
    %246 = vmatpush.msra.mxu0 %v226
    %247 = vmatmul.f32.gmra.mxu0 %v229
    %v248 = vpop.f32.mrf.mxu0
    %v249 = vadd.f32 0.0, %v248
    %250 = vdwg.mxu0
    %251 = vrot.lane.b32.xlu0 %v76, 96
    %v252 = vpop.permute.xlu0 %251
    %v253 = vsel %vm51, %v113, 0
    %v255 = vsel %vm51, %v252, 0
    %257 = vmatpush.xpose.msra.mxu0 0.0
    %258 = vmatpush.xpose.msra.mxu0 0.0
    %259 = vmatpush.xpose.msra.mxu0 0.0
    %260 = vmatpush.xpose.msra.mxu0 0.0
    %261 = vmatpush.xpose.msra.mxu0 0.0
    %262 = vmatpush.xpose.msra.mxu0 0.0
    %263 = vmatpush.xpose.msra.mxu0 0.0
    %264 = vmatpush.xpose.msra.mxu0 0.0
    %265 = vmatpush.xpose.msra.mxu0 0.0
    %266 = vmatpush.xpose.msra.mxu0 0.0
    %267 = vmatpush.xpose.msra.mxu0 0.0
    %268 = vmatpush.xpose.msra.mxu0 0.0
    %269 = vmatpush.xpose.msra.mxu0 0.0
    %270 = vmatpush.xpose.msra.mxu0 0.0
    %271 = vmatpush.xpose.msra.mxu0 0.0
    %272 = vmatpush.xpose.msra.mxu0 %v255
    %273 = vmatmul.f32.gmra.mxu0 %v253
    %v274 = vpop.f32.mrf.mxu0
    %v275 = vadd.f32 0.0, %v274
    %276 = vdwg.mxu0
    %277 = vrot.lane.b32.xlu0 %v79, 96
    %v278 = vpop.permute.xlu0 %277
    %v279 = vsel %vm51, %v116, 0
    %v281 = vsel %vm51, %v278, 0
    %283 = vmatpush.xpose.msra.mxu0 0.0
    %284 = vmatpush.xpose.msra.mxu0 0.0
    %285 = vmatpush.xpose.msra.mxu0 0.0
    %286 = vmatpush.xpose.msra.mxu0 0.0
    %287 = vmatpush.xpose.msra.mxu0 0.0
    %288 = vmatpush.xpose.msra.mxu0 0.0
    %289 = vmatpush.xpose.msra.mxu0 0.0
    %290 = vmatpush.xpose.msra.mxu0 0.0
    %291 = vmatpush.xpose.msra.mxu0 0.0
    %292 = vmatpush.xpose.msra.mxu0 0.0
    %293 = vmatpush.xpose.msra.mxu0 0.0
    %294 = vmatpush.xpose.msra.mxu0 0.0
    %295 = vmatpush.xpose.msra.mxu0 0.0
    %296 = vmatpush.xpose.msra.mxu0 0.0
    %297 = vmatpush.xpose.msra.mxu0 0.0
    %298 = vmatpush.xpose.msra.mxu0 %v281
    %299 = vmatmul.f32.gmra.mxu0 %v279
    %v300 = vpop.f32.mrf.mxu0
    %v301 = vadd.f32 0.0, %v300
    %302 = vdwg.mxu0
    %v303 = vmul.f32 %v275, 0.17677669
    %v304 = vmul.f32 %v301, 0.17677669
    %v305 = vsel %vm176, %v303, -inf
    %306 = vmax.xlane.f32.xlu0 %v305
    %v307 = vpop.xlane.xlu0 %306
    %v308 = vsel %vm176, %v304, -inf
    %309 = vmax.xlane.f32.xlu0 %v308
    %v310 = vpop.xlane.xlu0 %309
    %v311 = vsub.f32 %v303, %v307
    %v312 = vsub.f32 %v304, %v310
    %v313 = vmul.f32 %v311, 1.442695
    %v314 = vpow.pop %v313
    %v315 = vmul.f32 %v312, 1.442695
    %v316 = vpow.pop %v315
    %v317 = vsel %vm176, %v314, 0.0
    %318 = vadd.xlane.f32.xlu0 %v317
    %v319 = vpop.xlane.xlu0 %318
    %v320 = vsel %vm176, %v316, 0.0
    %321 = vadd.xlane.f32.xlu0 %v320
    %v322 = vpop.xlane.xlu0 %321
    %v323 = vrcp.pop %v319
    %v324 = vrcp.pop %v322
    %v325 = vmul.f32 %v314, %v323
    %v326 = vmul.f32 %v316, %v324
    %327 = vrot.lane.b32.xlu0 %v76, 64
    %v328 = vpop.permute.xlu0 %327
    %v331 = vsel %vm176, %v325, 0
    %333 = vmatpush.msra.mxu0 0.0
    %334 = vmatpush.msra.mxu0 0.0
    %335 = vmatpush.msra.mxu0 0.0
    %336 = vmatpush.msra.mxu0 0.0
    %337 = vmatpush.msra.mxu0 0.0
    %338 = vmatpush.msra.mxu0 0.0
    %339 = vmatpush.msra.mxu0 0.0
    %340 = vmatpush.msra.mxu0 0.0
    %341 = vmatpush.msra.mxu0 0.0
    %342 = vmatpush.msra.mxu0 0.0
    %343 = vmatpush.msra.mxu0 0.0
    %344 = vmatpush.msra.mxu0 0.0
    %345 = vmatpush.msra.mxu0 0.0
    %346 = vmatpush.msra.mxu0 0.0
    %347 = vmatpush.msra.mxu0 0.0
    %348 = vmatpush.msra.mxu0 %v328
    %349 = vmatmul.f32.gmra.mxu0 %v331
    %v350 = vpop.f32.mrf.mxu0
    %v351 = vadd.f32 0.0, %v350
    %352 = vdwg.mxu0
    %353 = vrot.lane.b32.xlu0 %v79, 64
    %v354 = vpop.permute.xlu0 %353
    %v357 = vsel %vm176, %v326, 0
    %359 = vmatpush.msra.mxu0 0.0
    %360 = vmatpush.msra.mxu0 0.0
    %361 = vmatpush.msra.mxu0 0.0
    %362 = vmatpush.msra.mxu0 0.0
    %363 = vmatpush.msra.mxu0 0.0
    %364 = vmatpush.msra.mxu0 0.0
    %365 = vmatpush.msra.mxu0 0.0
    %366 = vmatpush.msra.mxu0 0.0
    %367 = vmatpush.msra.mxu0 0.0
    %368 = vmatpush.msra.mxu0 0.0
    %369 = vmatpush.msra.mxu0 0.0
    %370 = vmatpush.msra.mxu0 0.0
    %371 = vmatpush.msra.mxu0 0.0
    %372 = vmatpush.msra.mxu0 0.0
    %373 = vmatpush.msra.mxu0 0.0
    %374 = vmatpush.msra.mxu0 %v354
    %375 = vmatmul.f32.gmra.mxu0 %v357
    %v376 = vpop.f32.mrf.mxu0
    %v377 = vadd.f32 0.0, %v376
    %378 = vdwg.mxu0
    %v379 = vld [vmem:[%s6] sm:$0xff]
    %v380 = vld [vmem:[%s6 + $0x8] sm:$0xff]
    %v381 = vld [vmem:[%s6 + $0x10] sm:$0xff]
    %v382 = vld [vmem:[%s6 + $0x18] sm:$0xff]
    %v383 = vld [vmem:[%s7] sm:$0x1]
    %v385 = vperm.slane %v383, 0
    %v388 = vsel %vm51, %v223, 0
    %v391 = vsel %vm51, %v249, 0
    %v394 = vsel %vm51, %v351, 0
    %v397 = vsel %vm51, %v377, 0
    %399 = vmatpush.msra.mxu0 0.0
    %400 = vmatpush.msra.mxu0 0.0
    %401 = vmatpush.msra.mxu0 0.0
    %402 = vmatpush.msra.mxu0 0.0
    %403 = vmatpush.msra.mxu0 0.0
    %404 = vmatpush.msra.mxu0 0.0
    %405 = vmatpush.msra.mxu0 0.0
    %406 = vmatpush.msra.mxu0 0.0
    %407 = vmatpush.msra.mxu0 0.0
    %408 = vmatpush.msra.mxu0 0.0
    %409 = vmatpush.msra.mxu0 0.0
    %410 = vmatpush.msra.mxu0 0.0
    %411 = vmatpush.msra.mxu0 %v382
    %412 = vmatpush.msra.mxu0 %v381
    %413 = vmatpush.msra.mxu0 %v380
    %414 = vmatpush.msra.mxu0 %v379
    %415 = vmatmul.f32.gmra.mxu0 %v388
    %v416 = vpop.f32.mrf.mxu0
    %v417 = vadd.f32 %v385, %v416
    %418 = vmatmul.f32.gmra.mxu0 %v391
    %v419 = vpop.f32.mrf.mxu0
    %v420 = vadd.f32 %v385, %v419
    %421 = vmatmul.f32.gmra.mxu0 %v394
    %v422 = vpop.f32.mrf.mxu0
    %v423 = vadd.f32 %v385, %v422
    %424 = vmatmul.f32.gmra.mxu0 %v397
    %v425 = vpop.f32.mrf.mxu0
    %v426 = vadd.f32 %v385, %v425
    %427 = vdwg.mxu0
    %v429 = vrot.slane %v420, 7
    %v432 = vrot.slane %v423, 6
    %v435 = vrot.slane %v426, 5
    %v438 = vrot.slane %v417, 5
    %v440 = vrot.slane %v420, 4
    %v442 = vrot.slane %v423, 3
    %v444 = vrot.slane %v426, 2
    %v446 = vrot.slane %v417, 2
    %v448 = vrot.slane %v420, 1
    %v450 = vrot.slane %v426, 7
    %v452 = vrot.slane %v417, 7
    %v454 = vrot.slane %v420, 6
    %v456 = vrot.slane %v423, 5
    %v458 = vrot.slane %v426, 4
    %vm460 = vcmask 1040384
    %v461 = vsel %vm460, %v417, %v429
    %vm462 = vcmask 1041408
    %v463 = vsel %vm462, %v461, %v432
    %vm464 = vcmask 1042432
    %v465 = vsel %vm464, %v463, %v435
    %vm466 = vcmask 1043456
    %v467 = vsel %vm466, %v465, %v438
    %vm468 = vcmask 1044480
    %v469 = vsel %vm468, %v467, %v440
    %vm470 = vcmask 1045504
    %v471 = vsel %vm470, %v469, %v442
    %vm472 = vcmask 1046528
    %v473 = vsel %vm472, %v471, %v444
    %v474 = vsel %vm460, %v446, %v448
    %v475 = vsel %vm462, %v474, %v423
    %v476 = vsel %vm464, %v475, %v450
    %v477 = vsel %vm466, %v476, %v452
    %v478 = vsel %vm468, %v477, %v454
    %v479 = vsel %vm470, %v478, %v456
    %v480 = vsel %vm472, %v479, %v458
    %v481 = vrot.slane %v417, 4
    %v483 = vrot.slane %v420, 3
    %v485 = vrot.slane %v423, 2
    %v487 = vrot.slane %v426, 1
    %v489 = vrot.slane %v417, 1
    %v491 = vrot.slane %v423, 7
    %v493 = vrot.slane %v426, 6
    %v495 = vrot.slane %v417, 6
    %v497 = vrot.slane %v420, 5
    %v499 = vrot.slane %v423, 4
    %v501 = vrot.slane %v426, 3
    %v503 = vrot.slane %v417, 3
    %v505 = vrot.slane %v420, 2
    %v507 = vrot.slane %v423, 1
    %v509 = vsel %vm460, %v481, %v483
    %v510 = vsel %vm462, %v509, %v485
    %v511 = vsel %vm464, %v510, %v487
    %v512 = vsel %vm466, %v511, %v489
    %v513 = vsel %vm468, %v512, %v420
    %v514 = vsel %vm470, %v513, %v491
    %v515 = vsel %vm472, %v514, %v493
    %v516 = vsel %vm460, %v495, %v497
    %v517 = vsel %vm462, %v516, %v499
    %v518 = vsel %vm464, %v517, %v501
    %v519 = vsel %vm466, %v518, %v503
    %v520 = vsel %vm468, %v519, %v505
    %v521 = vsel %vm470, %v520, %v507
    %v522 = vsel %vm472, %v521, %v426
    %v523 = vld [vmem:[%s8] sm:$0xff]
    %v524 = vld [vmem:[%s8 + $0x8] sm:$0xff]
    %v525 = vld [vmem:[%s8 + $0x10] sm:$0xff]
    %v526 = vld [vmem:[%s8 + $0x18] sm:$0xff]
    %v527 = vld [vmem:[%s8 + $0x20] sm:$0xff]
    %v528 = vld [vmem:[%s8 + $0x28] sm:$0xff]
    %v529 = vld [vmem:[%s8 + $0x30] sm:$0xff]
    %v530 = vld [vmem:[%s8 + $0x38] sm:$0xff]
    %v531 = vld [vmem:[%s9] sm:$0x3]
    %v533 = vperm.slane %v531, 0
    %v534 = vperm.slane %v531, 1
    %v538 = vsel %vm51, %v473, 0
    %v541 = vsel %vm51, %v480, 0
    %v544 = vsel %vm51, %v515, 0
    %v547 = vsel %vm51, %v522, 0
    %549 = vmatpush.msra.mxu0 0.0
    %550 = vmatpush.msra.mxu0 0.0
    %551 = vmatpush.msra.mxu0 0.0
    %552 = vmatpush.msra.mxu0 0.0
    %553 = vmatpush.msra.mxu0 0.0
    %554 = vmatpush.msra.mxu0 0.0
    %555 = vmatpush.msra.mxu0 0.0
    %556 = vmatpush.msra.mxu0 0.0
    %557 = vmatpush.msra.mxu0 0.0
    %558 = vmatpush.msra.mxu0 0.0
    %559 = vmatpush.msra.mxu0 0.0
    %560 = vmatpush.msra.mxu0 0.0
    %561 = vmatpush.msra.mxu0 %v529
    %562 = vmatpush.msra.mxu0 %v527
    %563 = vmatpush.msra.mxu0 %v525
    %564 = vmatpush.msra.mxu0 %v523
    %565 = vmatmul.f32.gmra.mxu0 %v538
    %v566 = vpop.f32.mrf.mxu0
    %v567 = vadd.f32 %v533, %v566
    %568 = vmatmul.f32.gmra.mxu0 %v541
    %v569 = vpop.f32.mrf.mxu0
    %v570 = vadd.f32 %v533, %v569
    %571 = vmatmul.f32.gmra.mxu0 %v544
    %v572 = vpop.f32.mrf.mxu0
    %v573 = vadd.f32 %v533, %v572
    %574 = vmatmul.f32.gmra.mxu0 %v547
    %v575 = vpop.f32.mrf.mxu0
    %v576 = vadd.f32 %v533, %v575
    %577 = vdwg.mxu0
    %578 = vmatpush.msra.mxu0 0.0
    %579 = vmatpush.msra.mxu0 0.0
    %580 = vmatpush.msra.mxu0 0.0
    %581 = vmatpush.msra.mxu0 0.0
    %582 = vmatpush.msra.mxu0 0.0
    %583 = vmatpush.msra.mxu0 0.0
    %584 = vmatpush.msra.mxu0 0.0
    %585 = vmatpush.msra.mxu0 0.0
    %586 = vmatpush.msra.mxu0 0.0
    %587 = vmatpush.msra.mxu0 0.0
    %588 = vmatpush.msra.mxu0 0.0
    %589 = vmatpush.msra.mxu0 0.0
    %590 = vmatpush.msra.mxu0 %v530
    %591 = vmatpush.msra.mxu0 %v528
    %592 = vmatpush.msra.mxu0 %v526
    %593 = vmatpush.msra.mxu0 %v524
    %594 = vmatmul.f32.gmra.mxu0 %v538
    %v595 = vpop.f32.mrf.mxu0
    %v596 = vadd.f32 %v534, %v595
    %597 = vmatmul.f32.gmra.mxu0 %v541
    %v598 = vpop.f32.mrf.mxu0
    %v599 = vadd.f32 %v534, %v598
    %600 = vmatmul.f32.gmra.mxu0 %v544
    %v601 = vpop.f32.mrf.mxu0
    %v602 = vadd.f32 %v534, %v601
    %603 = vmatmul.f32.gmra.mxu0 %v547
    %v604 = vpop.f32.mrf.mxu0
    %v605 = vadd.f32 %v534, %v604
    %606 = vdwg.mxu0
    %v608 = vrot.slane %v605, 4
    %609 = vrot.lane.b32.xlu0 %v608, 32
    %v610 = vpop.permute.xlu0 %609
    %613 = vrot.lane.b32.xlu0 %v567, 32
    %v614 = vpop.permute.xlu0 %613
    %616 = vrot.lane.b32.xlu0 %v608, 64
    %v617 = vpop.permute.xlu0 %616
    %619 = vrot.lane.b32.xlu0 %v567, 64
    %v620 = vpop.permute.xlu0 %619
    %622 = vrot.lane.b32.xlu0 %v608, 96
    %v623 = vpop.permute.xlu0 %622
    %625 = vrot.lane.b32.xlu0 %v567, 96
    %v626 = vpop.permute.xlu0 %625
    %v629 = vsel %vm51, %v567, %v610
    %vm630 = vcmask 523264
    %v631 = vsel %vm630, %v629, %v614
    %vm632 = vcmask 785408
    %v633 = vsel %vm632, %v631, %v617
    %v634 = vsel %vm51, %v620, %v623
    %v635 = vsel %vm630, %v634, %v626
    %v636 = vsel %vm632, %v635, %v608
    %v638 = vrot.slane %v602, 4
    %639 = vrot.lane.b32.xlu0 %v638, 32
    %v640 = vpop.permute.xlu0 %639
    %643 = vrot.lane.b32.xlu0 %v570, 32
    %v644 = vpop.permute.xlu0 %643
    %646 = vrot.lane.b32.xlu0 %v638, 64
    %v647 = vpop.permute.xlu0 %646
    %649 = vrot.lane.b32.xlu0 %v570, 64
    %v650 = vpop.permute.xlu0 %649
    %652 = vrot.lane.b32.xlu0 %v638, 96
    %v653 = vpop.permute.xlu0 %652
    %655 = vrot.lane.b32.xlu0 %v570, 96
    %v656 = vpop.permute.xlu0 %655
    %v659 = vsel %vm51, %v570, %v640
    %v660 = vsel %vm630, %v659, %v644
    %v661 = vsel %vm632, %v660, %v647
    %v662 = vsel %vm51, %v650, %v653
    %v663 = vsel %vm630, %v662, %v656
    %v664 = vsel %vm632, %v663, %v638
    %v666 = vrot.slane %v599, 4
    %667 = vrot.lane.b32.xlu0 %v666, 32
    %v668 = vpop.permute.xlu0 %667
    %671 = vrot.lane.b32.xlu0 %v573, 32
    %v672 = vpop.permute.xlu0 %671
    %674 = vrot.lane.b32.xlu0 %v666, 64
    %v675 = vpop.permute.xlu0 %674
    %677 = vrot.lane.b32.xlu0 %v573, 64
    %v678 = vpop.permute.xlu0 %677
    %680 = vrot.lane.b32.xlu0 %v666, 96
    %v681 = vpop.permute.xlu0 %680
    %683 = vrot.lane.b32.xlu0 %v573, 96
    %v684 = vpop.permute.xlu0 %683
    %v687 = vsel %vm51, %v573, %v668
    %v688 = vsel %vm630, %v687, %v672
    %v689 = vsel %vm632, %v688, %v675
    %v690 = vsel %vm51, %v678, %v681
    %v691 = vsel %vm630, %v690, %v684
    %v692 = vsel %vm632, %v691, %v666
    %v694 = vrot.slane %v596, 4
    %695 = vrot.lane.b32.xlu0 %v694, 32
    %v696 = vpop.permute.xlu0 %695
    %699 = vrot.lane.b32.xlu0 %v576, 32
    %v700 = vpop.permute.xlu0 %699
    %702 = vrot.lane.b32.xlu0 %v694, 64
    %v703 = vpop.permute.xlu0 %702
    %705 = vrot.lane.b32.xlu0 %v576, 64
    %v706 = vpop.permute.xlu0 %705
    %708 = vrot.lane.b32.xlu0 %v694, 96
    %v709 = vpop.permute.xlu0 %708
    %711 = vrot.lane.b32.xlu0 %v576, 96
    %v712 = vpop.permute.xlu0 %711
    %v715 = vsel %vm51, %v576, %v696
    %v716 = vsel %vm630, %v715, %v700
    %v717 = vsel %vm632, %v716, %v703
    %v718 = vsel %vm51, %v706, %v709
    %v719 = vsel %vm630, %v718, %v712
    %v720 = vsel %vm632, %v719, %v694
    %v721 = vld [vmem:[%s10] sm:$0xff]
    %v722 = vld [vmem:[%s10 + $0x8] sm:$0xff]
    %v723 = vld [vmem:[%s10 + $0x10] sm:$0xff]
    %v724 = vld [vmem:[%s10 + $0x18] sm:$0xff]
    %v725 = vld [vmem:[%s10 + $0x20] sm:$0xff]
    %v726 = vld [vmem:[%s10 + $0x28] sm:$0xff]
    %v727 = vld [vmem:[%s10 + $0x30] sm:$0xff]
    %v728 = vld [vmem:[%s10 + $0x38] sm:$0xff]
    %v729 = vld [vmem:[%s10 + $0x40] sm:$0xff]
    %v730 = vld [vmem:[%s10 + $0x48] sm:$0xff]
    %v731 = vld [vmem:[%s10 + $0x50] sm:$0xff]
    %v732 = vld [vmem:[%s10 + $0x58] sm:$0xff]
    %v733 = vld [vmem:[%s10 + $0x60] sm:$0xff]
    %v734 = vld [vmem:[%s10 + $0x68] sm:$0xff]
    %v735 = vld [vmem:[%s10 + $0x70] sm:$0xff]
    %v736 = vld [vmem:[%s10 + $0x78] sm:$0xff]
    %v738 = vsel %vm630, 0.0, 0
    %740 = vmatpush.msra.mxu0 0.0
    %741 = vmatpush.msra.mxu0 0.0
    %742 = vmatpush.msra.mxu0 0.0
    %743 = vmatpush.msra.mxu0 0.0
    %744 = vmatpush.msra.mxu0 0.0
    %745 = vmatpush.msra.mxu0 0.0
    %746 = vmatpush.msra.mxu0 0.0
    %747 = vmatpush.msra.mxu0 0.0
    %748 = vmatpush.msra.mxu0 %v735
    %749 = vmatpush.msra.mxu0 %v733
    %750 = vmatpush.msra.mxu0 %v731
    %751 = vmatpush.msra.mxu0 %v729
    %752 = vmatpush.msra.mxu0 %v727
    %753 = vmatpush.msra.mxu0 %v725
    %754 = vmatpush.msra.mxu0 %v723
    %755 = vmatpush.msra.mxu0 %v721
    %756 = vmatmul.f32.gmra.mxu0 %v738
    %v757 = vpop.f32.mrf.mxu0
    %v758 = vadd.f32 0.0, %v757
    %759 = vdwg.mxu0
    %760 = vmatpush.msra.mxu0 0.0
    %761 = vmatpush.msra.mxu0 0.0
    %762 = vmatpush.msra.mxu0 0.0
    %763 = vmatpush.msra.mxu0 0.0
    %764 = vmatpush.msra.mxu0 0.0
    %765 = vmatpush.msra.mxu0 0.0
    %766 = vmatpush.msra.mxu0 0.0
    %767 = vmatpush.msra.mxu0 0.0
    %768 = vmatpush.msra.mxu0 %v736
    %769 = vmatpush.msra.mxu0 %v734
    %770 = vmatpush.msra.mxu0 %v732
    %771 = vmatpush.msra.mxu0 %v730
    %772 = vmatpush.msra.mxu0 %v728
    %773 = vmatpush.msra.mxu0 %v726
    %774 = vmatpush.msra.mxu0 %v724
    %775 = vmatpush.msra.mxu0 %v722
    %776 = vmatmul.f32.gmra.mxu0 %v738
    %v777 = vpop.f32.mrf.mxu0
    %v778 = vadd.f32 0.0, %v777
    %779 = vdwg.mxu0
    %v780 = vadd.f32 %v633, %v758
    %v781 = vadd.f32 %v636, %v778
    %v782 = vxor.u32 %v780, 2147483648
    %v783 = vxor.u32 %v781, 2147483648
    %v784 = vmul.f32 %v782, 1.442695
    %v785 = vpow.pop %v784
    %v786 = vmul.f32 %v783, 1.442695
    %v787 = vpow.pop %v786
    %v788 = vadd.f32 %v785, 1.0
    %v789 = vadd.f32 %v787, 1.0
    %v790 = vrcp.pop %v788
    %v791 = vmul.f32 %v788, %v790
    %v792 = vsub.f32 1.0, %v791
    %v793 = vmul.f32 %v790, %v792
    %v794 = vadd.f32 %v790, %v793
    %vm795 = vweird.f32 %v788
    %vm796 = vweird.f32 %v790
    %vm797 = vmor %vm795, %vm796
    %v798 = vsel %vm797, %v790, %v794
    %v799 = vand.u32 2147483647, %v788
    %vm800 = vcmp.eq.f32.partialorder %v799, 8.507059e+37
    %v801 = vand.u32 %v788, 2147483648
    %v802 = vor.u32 1.1754944e-38, %v801
    %v803 = vsel %vm800, %v802, %v798
    %v804 = vmul.f32 1.0, %v803
    %v805 = vrcp.pop %v789
    %v806 = vmul.f32 %v789, %v805
    %v807 = vsub.f32 1.0, %v806
    %v808 = vmul.f32 %v805, %v807
    %v809 = vadd.f32 %v805, %v808
    %vm810 = vweird.f32 %v789
    %vm811 = vweird.f32 %v805
    %vm812 = vmor %vm810, %vm811
    %v813 = vsel %vm812, %v805, %v809
    %v814 = vand.u32 2147483647, %v789
    %vm815 = vcmp.eq.f32.partialorder %v814, 8.507059e+37
    %v816 = vand.u32 %v789, 2147483648
    %v817 = vor.u32 1.1754944e-38, %v816
    %v818 = vsel %vm815, %v817, %v813
    %v819 = vmul.f32 1.0, %v818
    %v820 = vtanh.pop %v781
    %v821 = vmul.f32 %v804, 0.0
    %823 = vrot.lane.b32.xlu0 %v820, 64
    %v824 = vpop.permute.xlu0 %823
    %v826 = vmul.f32 %v804, %v824
    %828 = vrot.lane.b32.xlu0 %v826, 64
    %v829 = vpop.permute.xlu0 %828
    %v831 = vadd.f32 %v821, %v829
    %v832 = vtanh.pop %v831
    %834 = vrot.lane.b32.xlu0 %v832, 64
    %v835 = vpop.permute.xlu0 %834
    %v837 = vmul.f32 %v819, %v835
    %v839 = vsel %vm630, %v837, 0
    %841 = vmatpush.msra.mxu0 0.0
    %842 = vmatpush.msra.mxu0 0.0
    %843 = vmatpush.msra.mxu0 0.0
    %844 = vmatpush.msra.mxu0 0.0
    %845 = vmatpush.msra.mxu0 0.0
    %846 = vmatpush.msra.mxu0 0.0
    %847 = vmatpush.msra.mxu0 0.0
    %848 = vmatpush.msra.mxu0 0.0
    %849 = vmatpush.msra.mxu0 %v735
    %850 = vmatpush.msra.mxu0 %v733
    %851 = vmatpush.msra.mxu0 %v731
    %852 = vmatpush.msra.mxu0 %v729
    %853 = vmatpush.msra.mxu0 %v727
    %854 = vmatpush.msra.mxu0 %v725
    %855 = vmatpush.msra.mxu0 %v723
    %856 = vmatpush.msra.mxu0 %v721
    %857 = vmatmul.f32.gmra.mxu0 %v839
    %v858 = vpop.f32.mrf.mxu0
    %v859 = vadd.f32 0.0, %v858
    %860 = vdwg.mxu0
    %861 = vmatpush.msra.mxu0 0.0
    %862 = vmatpush.msra.mxu0 0.0
    %863 = vmatpush.msra.mxu0 0.0
    %864 = vmatpush.msra.mxu0 0.0
    %865 = vmatpush.msra.mxu0 0.0
    %866 = vmatpush.msra.mxu0 0.0
    %867 = vmatpush.msra.mxu0 0.0
    %868 = vmatpush.msra.mxu0 0.0
    %869 = vmatpush.msra.mxu0 %v736
    %870 = vmatpush.msra.mxu0 %v734
    %871 = vmatpush.msra.mxu0 %v732
    %872 = vmatpush.msra.mxu0 %v730
    %873 = vmatpush.msra.mxu0 %v728
    %874 = vmatpush.msra.mxu0 %v726
    %875 = vmatpush.msra.mxu0 %v724
    %876 = vmatpush.msra.mxu0 %v722
    %877 = vmatmul.f32.gmra.mxu0 %v839
    %v878 = vpop.f32.mrf.mxu0
    %v879 = vadd.f32 0.0, %v878
    %880 = vdwg.mxu0
    %v883 = vrot.slane %v859, 4
    %v884 = vrot.slane %v879, 4
    %v887 = vadd.f32 %v633, %v883
    %v888 = vadd.f32 %v636, %v884
    %v889 = vxor.u32 %v887, 2147483648
    %v890 = vxor.u32 %v888, 2147483648
    %v891 = vmul.f32 %v889, 1.442695
    %v892 = vpow.pop %v891
    %v893 = vmul.f32 %v890, 1.442695
    %v894 = vpow.pop %v893
    %v895 = vadd.f32 %v892, 1.0
    %v896 = vadd.f32 %v894, 1.0
    %v897 = vrcp.pop %v895
    %v898 = vmul.f32 %v895, %v897
    %v899 = vsub.f32 1.0, %v898
    %v900 = vmul.f32 %v897, %v899
    %v901 = vadd.f32 %v897, %v900
    %vm902 = vweird.f32 %v895
    %vm903 = vweird.f32 %v897
    %vm904 = vmor %vm902, %vm903
    %v905 = vsel %vm904, %v897, %v901
    %v906 = vand.u32 2147483647, %v895
    %vm907 = vcmp.eq.f32.partialorder %v906, 8.507059e+37
    %v908 = vand.u32 %v895, 2147483648
    %v909 = vor.u32 1.1754944e-38, %v908
    %v910 = vsel %vm907, %v909, %v905
    %v911 = vmul.f32 1.0, %v910
    %v912 = vrcp.pop %v896
    %v913 = vmul.f32 %v896, %v912
    %v914 = vsub.f32 1.0, %v913
    %v915 = vmul.f32 %v912, %v914
    %v916 = vadd.f32 %v912, %v915
    %vm917 = vweird.f32 %v896
    %vm918 = vweird.f32 %v912
    %vm919 = vmor %vm917, %vm918
    %v920 = vsel %vm919, %v912, %v916
    %v921 = vand.u32 2147483647, %v896
    %vm922 = vcmp.eq.f32.partialorder %v921, 8.507059e+37
    %v923 = vand.u32 %v896, 2147483648
    %v924 = vor.u32 1.1754944e-38, %v923
    %v925 = vsel %vm922, %v924, %v920
    %v926 = vmul.f32 1.0, %v925
    %v927 = vtanh.pop %v888
    %v929 = vrot.slane %v831, 4
    %v931 = vmul.f32 %v911, %v929
    %933 = vrot.lane.b32.xlu0 %v927, 64
    %v934 = vpop.permute.xlu0 %933
    %v936 = vmul.f32 %v911, %v934
    %938 = vrot.lane.b32.xlu0 %v936, 64
    %v939 = vpop.permute.xlu0 %938
    %v941 = vadd.f32 %v931, %v939
    %v942 = vtanh.pop %v941
    %944 = vrot.lane.b32.xlu0 %v942, 64
    %v945 = vpop.permute.xlu0 %944
    %v947 = vmul.f32 %v926, %v945
    %v949 = vrot.slane %v947, 4
    %v950 = vsel %vm630, %v949, 0
    %952 = vmatpush.msra.mxu0 0.0
    %953 = vmatpush.msra.mxu0 0.0
    %954 = vmatpush.msra.mxu0 0.0
    %955 = vmatpush.msra.mxu0 0.0
    %956 = vmatpush.msra.mxu0 0.0
    %957 = vmatpush.msra.mxu0 0.0
    %958 = vmatpush.msra.mxu0 0.0
    %959 = vmatpush.msra.mxu0 0.0
    %960 = vmatpush.msra.mxu0 %v735
    %961 = vmatpush.msra.mxu0 %v733
    %962 = vmatpush.msra.mxu0 %v731
    %963 = vmatpush.msra.mxu0 %v729
    %964 = vmatpush.msra.mxu0 %v727
    %965 = vmatpush.msra.mxu0 %v725
    %966 = vmatpush.msra.mxu0 %v723
    %967 = vmatpush.msra.mxu0 %v721
    %968 = vmatmul.f32.gmra.mxu0 %v950
    %v969 = vpop.f32.mrf.mxu0
    %v970 = vadd.f32 0.0, %v969
    %971 = vdwg.mxu0
    %972 = vmatpush.msra.mxu0 0.0
    %973 = vmatpush.msra.mxu0 0.0
    %974 = vmatpush.msra.mxu0 0.0
    %975 = vmatpush.msra.mxu0 0.0
    %976 = vmatpush.msra.mxu0 0.0
    %977 = vmatpush.msra.mxu0 0.0
    %978 = vmatpush.msra.mxu0 0.0
    %979 = vmatpush.msra.mxu0 0.0
    %980 = vmatpush.msra.mxu0 %v736
    %981 = vmatpush.msra.mxu0 %v734
    %982 = vmatpush.msra.mxu0 %v732
    %983 = vmatpush.msra.mxu0 %v730
    %984 = vmatpush.msra.mxu0 %v728
    %985 = vmatpush.msra.mxu0 %v726
    %986 = vmatpush.msra.mxu0 %v724
    %987 = vmatpush.msra.mxu0 %v722
    %988 = vmatmul.f32.gmra.mxu0 %v950
    %v989 = vpop.f32.mrf.mxu0
    %v990 = vadd.f32 0.0, %v989
    %991 = vdwg.mxu0
    %v992 = vadd.f32 %v661, %v970
    %v993 = vadd.f32 %v664, %v990
    %v994 = vxor.u32 %v992, 2147483648
    %v995 = vxor.u32 %v993, 2147483648
    %v996 = vmul.f32 %v994, 1.442695
    %v997 = vpow.pop %v996
    %v998 = vmul.f32 %v995, 1.442695
    %v999 = vpow.pop %v998
    %v1000 = vadd.f32 %v997, 1.0
    %v1001 = vadd.f32 %v999, 1.0
    %v1002 = vrcp.pop %v1000
    %v1003 = vmul.f32 %v1000, %v1002
    %v1004 = vsub.f32 1.0, %v1003
    %v1005 = vmul.f32 %v1002, %v1004
    %v1006 = vadd.f32 %v1002, %v1005
    %vm1007 = vweird.f32 %v1000
    %vm1008 = vweird.f32 %v1002
    %vm1009 = vmor %vm1007, %vm1008
    %v1010 = vsel %vm1009, %v1002, %v1006
    %v1011 = vand.u32 2147483647, %v1000
    %vm1012 = vcmp.eq.f32.partialorder %v1011, 8.507059e+37
    %v1013 = vand.u32 %v1000, 2147483648
    %v1014 = vor.u32 1.1754944e-38, %v1013
    %v1015 = vsel %vm1012, %v1014, %v1010
    %v1016 = vmul.f32 1.0, %v1015
    %v1017 = vrcp.pop %v1001
    %v1018 = vmul.f32 %v1001, %v1017
    %v1019 = vsub.f32 1.0, %v1018
    %v1020 = vmul.f32 %v1017, %v1019
    %v1021 = vadd.f32 %v1017, %v1020
    %vm1022 = vweird.f32 %v1001
    %vm1023 = vweird.f32 %v1017
    %vm1024 = vmor %vm1022, %vm1023
    %v1025 = vsel %vm1024, %v1017, %v1021
    %v1026 = vand.u32 2147483647, %v1001
    %vm1027 = vcmp.eq.f32.partialorder %v1026, 8.507059e+37
    %v1028 = vand.u32 %v1001, 2147483648
    %v1029 = vor.u32 1.1754944e-38, %v1028
    %v1030 = vsel %vm1027, %v1029, %v1025
    %v1031 = vmul.f32 1.0, %v1030
    %v1032 = vtanh.pop %v993
    %v1034 = vrot.slane %v941, 4
    %v1036 = vmul.f32 %v1016, %v1034
    %1038 = vrot.lane.b32.xlu0 %v1032, 64
    %v1039 = vpop.permute.xlu0 %1038
    %v1041 = vmul.f32 %v1016, %v1039
    %1043 = vrot.lane.b32.xlu0 %v1041, 64
    %v1044 = vpop.permute.xlu0 %1043
    %v1046 = vadd.f32 %v1036, %v1044
    %v1047 = vtanh.pop %v1046
    %1049 = vrot.lane.b32.xlu0 %v1047, 64
    %v1050 = vpop.permute.xlu0 %1049
    %v1052 = vmul.f32 %v1031, %v1050
    %v1054 = vsel %vm630, %v1052, 0
    %1056 = vmatpush.msra.mxu0 0.0
    %1057 = vmatpush.msra.mxu0 0.0
    %1058 = vmatpush.msra.mxu0 0.0
    %1059 = vmatpush.msra.mxu0 0.0
    %1060 = vmatpush.msra.mxu0 0.0
    %1061 = vmatpush.msra.mxu0 0.0
    %1062 = vmatpush.msra.mxu0 0.0
    %1063 = vmatpush.msra.mxu0 0.0
    %1064 = vmatpush.msra.mxu0 %v735
    %1065 = vmatpush.msra.mxu0 %v733
    %1066 = vmatpush.msra.mxu0 %v731
    %1067 = vmatpush.msra.mxu0 %v729
    %1068 = vmatpush.msra.mxu0 %v727
    %1069 = vmatpush.msra.mxu0 %v725
    %1070 = vmatpush.msra.mxu0 %v723
    %1071 = vmatpush.msra.mxu0 %v721
    %1072 = vmatmul.f32.gmra.mxu0 %v1054
    %v1073 = vpop.f32.mrf.mxu0
    %v1074 = vadd.f32 0.0, %v1073
    %1075 = vdwg.mxu0
    %1076 = vmatpush.msra.mxu0 0.0
    %1077 = vmatpush.msra.mxu0 0.0
    %1078 = vmatpush.msra.mxu0 0.0
    %1079 = vmatpush.msra.mxu0 0.0
    %1080 = vmatpush.msra.mxu0 0.0
    %1081 = vmatpush.msra.mxu0 0.0
    %1082 = vmatpush.msra.mxu0 0.0
    %1083 = vmatpush.msra.mxu0 0.0
    %1084 = vmatpush.msra.mxu0 %v736
    %1085 = vmatpush.msra.mxu0 %v734
    %1086 = vmatpush.msra.mxu0 %v732
    %1087 = vmatpush.msra.mxu0 %v730
    %1088 = vmatpush.msra.mxu0 %v728
    %1089 = vmatpush.msra.mxu0 %v726
    %1090 = vmatpush.msra.mxu0 %v724
    %1091 = vmatpush.msra.mxu0 %v722
    %1092 = vmatmul.f32.gmra.mxu0 %v1054
    %v1093 = vpop.f32.mrf.mxu0
    %v1094 = vadd.f32 0.0, %v1093
    %1095 = vdwg.mxu0
    %v1098 = vrot.slane %v1074, 4
    %v1099 = vrot.slane %v1094, 4
    %v1102 = vadd.f32 %v661, %v1098
    %v1103 = vadd.f32 %v664, %v1099
    %v1104 = vxor.u32 %v1102, 2147483648
    %v1105 = vxor.u32 %v1103, 2147483648
    %v1106 = vmul.f32 %v1104, 1.442695
    %v1107 = vpow.pop %v1106
    %v1108 = vmul.f32 %v1105, 1.442695
    %v1109 = vpow.pop %v1108
    %v1110 = vadd.f32 %v1107, 1.0
    %v1111 = vadd.f32 %v1109, 1.0
    %v1112 = vrcp.pop %v1110
    %v1113 = vmul.f32 %v1110, %v1112
    %v1114 = vsub.f32 1.0, %v1113
    %v1115 = vmul.f32 %v1112, %v1114
    %v1116 = vadd.f32 %v1112, %v1115
    %vm1117 = vweird.f32 %v1110
    %vm1118 = vweird.f32 %v1112
    %vm1119 = vmor %vm1117, %vm1118
    %v1120 = vsel %vm1119, %v1112, %v1116
    %v1121 = vand.u32 2147483647, %v1110
    %vm1122 = vcmp.eq.f32.partialorder %v1121, 8.507059e+37
    %v1123 = vand.u32 %v1110, 2147483648
    %v1124 = vor.u32 1.1754944e-38, %v1123
    %v1125 = vsel %vm1122, %v1124, %v1120
    %v1126 = vmul.f32 1.0, %v1125
    %v1127 = vrcp.pop %v1111
    %v1128 = vmul.f32 %v1111, %v1127
    %v1129 = vsub.f32 1.0, %v1128
    %v1130 = vmul.f32 %v1127, %v1129
    %v1131 = vadd.f32 %v1127, %v1130
    %vm1132 = vweird.f32 %v1111
    %vm1133 = vweird.f32 %v1127
    %vm1134 = vmor %vm1132, %vm1133
    %v1135 = vsel %vm1134, %v1127, %v1131
    %v1136 = vand.u32 2147483647, %v1111
    %vm1137 = vcmp.eq.f32.partialorder %v1136, 8.507059e+37
    %v1138 = vand.u32 %v1111, 2147483648
    %v1139 = vor.u32 1.1754944e-38, %v1138
    %v1140 = vsel %vm1137, %v1139, %v1135
    %v1141 = vmul.f32 1.0, %v1140
    %v1142 = vtanh.pop %v1103
    %v1144 = vrot.slane %v1046, 4
    %v1146 = vmul.f32 %v1126, %v1144
    %1148 = vrot.lane.b32.xlu0 %v1142, 64
    %v1149 = vpop.permute.xlu0 %1148
    %v1151 = vmul.f32 %v1126, %v1149
    %1153 = vrot.lane.b32.xlu0 %v1151, 64
    %v1154 = vpop.permute.xlu0 %1153
    %v1156 = vadd.f32 %v1146, %v1154
    %v1157 = vtanh.pop %v1156
    %1159 = vrot.lane.b32.xlu0 %v1157, 64
    %v1160 = vpop.permute.xlu0 %1159
    %v1162 = vmul.f32 %v1141, %v1160
    %v1164 = vrot.slane %v1162, 4
    %v1165 = vsel %vm630, %v1164, 0
    %1167 = vmatpush.msra.mxu0 0.0
    %1168 = vmatpush.msra.mxu0 0.0
    %1169 = vmatpush.msra.mxu0 0.0
    %1170 = vmatpush.msra.mxu0 0.0
    %1171 = vmatpush.msra.mxu0 0.0
    %1172 = vmatpush.msra.mxu0 0.0
    %1173 = vmatpush.msra.mxu0 0.0
    %1174 = vmatpush.msra.mxu0 0.0
    %1175 = vmatpush.msra.mxu0 %v735
    %1176 = vmatpush.msra.mxu0 %v733
    %1177 = vmatpush.msra.mxu0 %v731
    %1178 = vmatpush.msra.mxu0 %v729
    %1179 = vmatpush.msra.mxu0 %v727
    %1180 = vmatpush.msra.mxu0 %v725
    %1181 = vmatpush.msra.mxu0 %v723
    %1182 = vmatpush.msra.mxu0 %v721
    %1183 = vmatmul.f32.gmra.mxu0 %v1165
    %v1184 = vpop.f32.mrf.mxu0
    %v1185 = vadd.f32 0.0, %v1184
    %1186 = vdwg.mxu0
    %1187 = vmatpush.msra.mxu0 0.0
    %1188 = vmatpush.msra.mxu0 0.0
    %1189 = vmatpush.msra.mxu0 0.0
    %1190 = vmatpush.msra.mxu0 0.0
    %1191 = vmatpush.msra.mxu0 0.0
    %1192 = vmatpush.msra.mxu0 0.0
    %1193 = vmatpush.msra.mxu0 0.0
    %1194 = vmatpush.msra.mxu0 0.0
    %1195 = vmatpush.msra.mxu0 %v736
    %1196 = vmatpush.msra.mxu0 %v734
    %1197 = vmatpush.msra.mxu0 %v732
    %1198 = vmatpush.msra.mxu0 %v730
    %1199 = vmatpush.msra.mxu0 %v728
    %1200 = vmatpush.msra.mxu0 %v726
    %1201 = vmatpush.msra.mxu0 %v724
    %1202 = vmatpush.msra.mxu0 %v722
    %1203 = vmatmul.f32.gmra.mxu0 %v1165
    %v1204 = vpop.f32.mrf.mxu0
    %v1205 = vadd.f32 0.0, %v1204
    %1206 = vdwg.mxu0
    %v1207 = vadd.f32 %v689, %v1185
    %v1208 = vadd.f32 %v692, %v1205
    %v1209 = vxor.u32 %v1207, 2147483648
    %v1210 = vxor.u32 %v1208, 2147483648
    %v1211 = vmul.f32 %v1209, 1.442695
    %v1212 = vpow.pop %v1211
    %v1213 = vmul.f32 %v1210, 1.442695
    %v1214 = vpow.pop %v1213
    %v1215 = vadd.f32 %v1212, 1.0
    %v1216 = vadd.f32 %v1214, 1.0
    %v1217 = vrcp.pop %v1215
    %v1218 = vmul.f32 %v1215, %v1217
    %v1219 = vsub.f32 1.0, %v1218
    %v1220 = vmul.f32 %v1217, %v1219
    %v1221 = vadd.f32 %v1217, %v1220
    %vm1222 = vweird.f32 %v1215
    %vm1223 = vweird.f32 %v1217
    %vm1224 = vmor %vm1222, %vm1223
    %v1225 = vsel %vm1224, %v1217, %v1221
    %v1226 = vand.u32 2147483647, %v1215
    %vm1227 = vcmp.eq.f32.partialorder %v1226, 8.507059e+37
    %v1228 = vand.u32 %v1215, 2147483648
    %v1229 = vor.u32 1.1754944e-38, %v1228
    %v1230 = vsel %vm1227, %v1229, %v1225
    %v1231 = vmul.f32 1.0, %v1230
    %v1232 = vrcp.pop %v1216
    %v1233 = vmul.f32 %v1216, %v1232
    %v1234 = vsub.f32 1.0, %v1233
    %v1235 = vmul.f32 %v1232, %v1234
    %v1236 = vadd.f32 %v1232, %v1235
    %vm1237 = vweird.f32 %v1216
    %vm1238 = vweird.f32 %v1232
    %vm1239 = vmor %vm1237, %vm1238
    %v1240 = vsel %vm1239, %v1232, %v1236
    %v1241 = vand.u32 2147483647, %v1216
    %vm1242 = vcmp.eq.f32.partialorder %v1241, 8.507059e+37
    %v1243 = vand.u32 %v1216, 2147483648
    %v1244 = vor.u32 1.1754944e-38, %v1243
    %v1245 = vsel %vm1242, %v1244, %v1240
    %v1246 = vmul.f32 1.0, %v1245
    %v1247 = vtanh.pop %v1208
    %v1249 = vrot.slane %v1156, 4
    %v1251 = vmul.f32 %v1231, %v1249
    %1253 = vrot.lane.b32.xlu0 %v1247, 64
    %v1254 = vpop.permute.xlu0 %1253
    %v1256 = vmul.f32 %v1231, %v1254
    %1258 = vrot.lane.b32.xlu0 %v1256, 64
    %v1259 = vpop.permute.xlu0 %1258
    %v1261 = vadd.f32 %v1251, %v1259
    %v1262 = vtanh.pop %v1261
    %1264 = vrot.lane.b32.xlu0 %v1262, 64
    %v1265 = vpop.permute.xlu0 %1264
    %v1267 = vmul.f32 %v1246, %v1265
    %v1269 = vsel %vm630, %v1267, 0
    %1271 = vmatpush.msra.mxu0 0.0
    %1272 = vmatpush.msra.mxu0 0.0
    %1273 = vmatpush.msra.mxu0 0.0
    %1274 = vmatpush.msra.mxu0 0.0
    %1275 = vmatpush.msra.mxu0 0.0
    %1276 = vmatpush.msra.mxu0 0.0
    %1277 = vmatpush.msra.mxu0 0.0
    %1278 = vmatpush.msra.mxu0 0.0
    %1279 = vmatpush.msra.mxu0 %v735
    %1280 = vmatpush.msra.mxu0 %v733
    %1281 = vmatpush.msra.mxu0 %v731
    %1282 = vmatpush.msra.mxu0 %v729
    %1283 = vmatpush.msra.mxu0 %v727
    %1284 = vmatpush.msra.mxu0 %v725
    %1285 = vmatpush.msra.mxu0 %v723
    %1286 = vmatpush.msra.mxu0 %v721
    %1287 = vmatmul.f32.gmra.mxu0 %v1269
    %v1288 = vpop.f32.mrf.mxu0
    %v1289 = vadd.f32 0.0, %v1288
    %1290 = vdwg.mxu0
    %1291 = vmatpush.msra.mxu0 0.0
    %1292 = vmatpush.msra.mxu0 0.0
    %1293 = vmatpush.msra.mxu0 0.0
    %1294 = vmatpush.msra.mxu0 0.0
    %1295 = vmatpush.msra.mxu0 0.0
    %1296 = vmatpush.msra.mxu0 0.0
    %1297 = vmatpush.msra.mxu0 0.0
    %1298 = vmatpush.msra.mxu0 0.0
    %1299 = vmatpush.msra.mxu0 %v736
    %1300 = vmatpush.msra.mxu0 %v734
    %1301 = vmatpush.msra.mxu0 %v732
    %1302 = vmatpush.msra.mxu0 %v730
    %1303 = vmatpush.msra.mxu0 %v728
    %1304 = vmatpush.msra.mxu0 %v726
    %1305 = vmatpush.msra.mxu0 %v724
    %1306 = vmatpush.msra.mxu0 %v722
    %1307 = vmatmul.f32.gmra.mxu0 %v1269
    %v1308 = vpop.f32.mrf.mxu0
    %v1309 = vadd.f32 0.0, %v1308
    %1310 = vdwg.mxu0
    %v1313 = vrot.slane %v1289, 4
    %v1314 = vrot.slane %v1309, 4
    %v1317 = vadd.f32 %v689, %v1313
    %v1318 = vadd.f32 %v692, %v1314
    %v1319 = vxor.u32 %v1317, 2147483648
    %v1320 = vxor.u32 %v1318, 2147483648
    %v1321 = vmul.f32 %v1319, 1.442695
    %v1322 = vpow.pop %v1321
    %v1323 = vmul.f32 %v1320, 1.442695
    %v1324 = vpow.pop %v1323
    %v1325 = vadd.f32 %v1322, 1.0
    %v1326 = vadd.f32 %v1324, 1.0
    %v1327 = vrcp.pop %v1325
    %v1328 = vmul.f32 %v1325, %v1327
    %v1329 = vsub.f32 1.0, %v1328
    %v1330 = vmul.f32 %v1327, %v1329
    %v1331 = vadd.f32 %v1327, %v1330
    %vm1332 = vweird.f32 %v1325
    %vm1333 = vweird.f32 %v1327
    %vm1334 = vmor %vm1332, %vm1333
    %v1335 = vsel %vm1334, %v1327, %v1331
    %v1336 = vand.u32 2147483647, %v1325
    %vm1337 = vcmp.eq.f32.partialorder %v1336, 8.507059e+37
    %v1338 = vand.u32 %v1325, 2147483648
    %v1339 = vor.u32 1.1754944e-38, %v1338
    %v1340 = vsel %vm1337, %v1339, %v1335
    %v1341 = vmul.f32 1.0, %v1340
    %v1342 = vrcp.pop %v1326
    %v1343 = vmul.f32 %v1326, %v1342
    %v1344 = vsub.f32 1.0, %v1343
    %v1345 = vmul.f32 %v1342, %v1344
    %v1346 = vadd.f32 %v1342, %v1345
    %vm1347 = vweird.f32 %v1326
    %vm1348 = vweird.f32 %v1342
    %vm1349 = vmor %vm1347, %vm1348
    %v1350 = vsel %vm1349, %v1342, %v1346
    %v1351 = vand.u32 2147483647, %v1326
    %vm1352 = vcmp.eq.f32.partialorder %v1351, 8.507059e+37
    %v1353 = vand.u32 %v1326, 2147483648
    %v1354 = vor.u32 1.1754944e-38, %v1353
    %v1355 = vsel %vm1352, %v1354, %v1350
    %v1356 = vmul.f32 1.0, %v1355
    %v1357 = vtanh.pop %v1318
    %v1359 = vrot.slane %v1261, 4
    %v1361 = vmul.f32 %v1341, %v1359
    %1363 = vrot.lane.b32.xlu0 %v1357, 64
    %v1364 = vpop.permute.xlu0 %1363
    %v1366 = vmul.f32 %v1341, %v1364
    %1368 = vrot.lane.b32.xlu0 %v1366, 64
    %v1369 = vpop.permute.xlu0 %1368
    %v1371 = vadd.f32 %v1361, %v1369
    %v1372 = vtanh.pop %v1371
    %1374 = vrot.lane.b32.xlu0 %v1372, 64
    %v1375 = vpop.permute.xlu0 %1374
    %v1377 = vmul.f32 %v1356, %v1375
    %v1379 = vrot.slane %v1377, 4
    %v1380 = vsel %vm630, %v1379, 0
    %1382 = vmatpush.msra.mxu0 0.0
    %1383 = vmatpush.msra.mxu0 0.0
    %1384 = vmatpush.msra.mxu0 0.0
    %1385 = vmatpush.msra.mxu0 0.0
    %1386 = vmatpush.msra.mxu0 0.0
    %1387 = vmatpush.msra.mxu0 0.0
    %1388 = vmatpush.msra.mxu0 0.0
    %1389 = vmatpush.msra.mxu0 0.0
    %1390 = vmatpush.msra.mxu0 %v735
    %1391 = vmatpush.msra.mxu0 %v733
    %1392 = vmatpush.msra.mxu0 %v731
    %1393 = vmatpush.msra.mxu0 %v729
    %1394 = vmatpush.msra.mxu0 %v727
    %1395 = vmatpush.msra.mxu0 %v725
    %1396 = vmatpush.msra.mxu0 %v723
    %1397 = vmatpush.msra.mxu0 %v721
    %1398 = vmatmul.f32.gmra.mxu0 %v1380
    %v1399 = vpop.f32.mrf.mxu0
    %v1400 = vadd.f32 0.0, %v1399
    %1401 = vdwg.mxu0
    %1402 = vmatpush.msra.mxu0 0.0
    %1403 = vmatpush.msra.mxu0 0.0
    %1404 = vmatpush.msra.mxu0 0.0
    %1405 = vmatpush.msra.mxu0 0.0
    %1406 = vmatpush.msra.mxu0 0.0
    %1407 = vmatpush.msra.mxu0 0.0
    %1408 = vmatpush.msra.mxu0 0.0
    %1409 = vmatpush.msra.mxu0 0.0
    %1410 = vmatpush.msra.mxu0 %v736
    %1411 = vmatpush.msra.mxu0 %v734
    %1412 = vmatpush.msra.mxu0 %v732
    %1413 = vmatpush.msra.mxu0 %v730
    %1414 = vmatpush.msra.mxu0 %v728
    %1415 = vmatpush.msra.mxu0 %v726
    %1416 = vmatpush.msra.mxu0 %v724
    %1417 = vmatpush.msra.mxu0 %v722
    %1418 = vmatmul.f32.gmra.mxu0 %v1380
    %v1419 = vpop.f32.mrf.mxu0
    %v1420 = vadd.f32 0.0, %v1419
    %1421 = vdwg.mxu0
    %v1422 = vadd.f32 %v717, %v1400
    %v1423 = vadd.f32 %v720, %v1420
    %v1424 = vxor.u32 %v1422, 2147483648
    %v1425 = vxor.u32 %v1423, 2147483648
    %v1426 = vmul.f32 %v1424, 1.442695
    %v1427 = vpow.pop %v1426
    %v1428 = vmul.f32 %v1425, 1.442695
    %v1429 = vpow.pop %v1428
    %v1430 = vadd.f32 %v1427, 1.0
    %v1431 = vadd.f32 %v1429, 1.0
    %v1432 = vrcp.pop %v1430
    %v1433 = vmul.f32 %v1430, %v1432
    %v1434 = vsub.f32 1.0, %v1433
    %v1435 = vmul.f32 %v1432, %v1434
    %v1436 = vadd.f32 %v1432, %v1435
    %vm1437 = vweird.f32 %v1430
    %vm1438 = vweird.f32 %v1432
    %vm1439 = vmor %vm1437, %vm1438
    %v1440 = vsel %vm1439, %v1432, %v1436
    %v1441 = vand.u32 2147483647, %v1430
    %vm1442 = vcmp.eq.f32.partialorder %v1441, 8.507059e+37
    %v1443 = vand.u32 %v1430, 2147483648
    %v1444 = vor.u32 1.1754944e-38, %v1443
    %v1445 = vsel %vm1442, %v1444, %v1440
    %v1446 = vmul.f32 1.0, %v1445
    %v1447 = vrcp.pop %v1431
    %v1448 = vmul.f32 %v1431, %v1447
    %v1449 = vsub.f32 1.0, %v1448
    %v1450 = vmul.f32 %v1447, %v1449
    %v1451 = vadd.f32 %v1447, %v1450
    %vm1452 = vweird.f32 %v1431
    %vm1453 = vweird.f32 %v1447
    %vm1454 = vmor %vm1452, %vm1453
    %v1455 = vsel %vm1454, %v1447, %v1451
    %v1456 = vand.u32 2147483647, %v1431
    %vm1457 = vcmp.eq.f32.partialorder %v1456, 8.507059e+37
    %v1458 = vand.u32 %v1431, 2147483648
    %v1459 = vor.u32 1.1754944e-38, %v1458
    %v1460 = vsel %vm1457, %v1459, %v1455
    %v1461 = vmul.f32 1.0, %v1460
    %v1462 = vtanh.pop %v1423
    %v1464 = vrot.slane %v1371, 4
    %v1466 = vmul.f32 %v1446, %v1464
    %1468 = vrot.lane.b32.xlu0 %v1462, 64
    %v1469 = vpop.permute.xlu0 %1468
    %v1471 = vmul.f32 %v1446, %v1469
    %1473 = vrot.lane.b32.xlu0 %v1471, 64
    %v1474 = vpop.permute.xlu0 %1473
    %v1476 = vadd.f32 %v1466, %v1474
    %v1477 = vtanh.pop %v1476
    %1479 = vrot.lane.b32.xlu0 %v1477, 64
    %v1480 = vpop.permute.xlu0 %1479
    %v1482 = vmul.f32 %v1461, %v1480
    %v1484 = vsel %vm630, %v1482, 0
    %1486 = vmatpush.msra.mxu0 0.0
    %1487 = vmatpush.msra.mxu0 0.0
    %1488 = vmatpush.msra.mxu0 0.0
    %1489 = vmatpush.msra.mxu0 0.0
    %1490 = vmatpush.msra.mxu0 0.0
    %1491 = vmatpush.msra.mxu0 0.0
    %1492 = vmatpush.msra.mxu0 0.0
    %1493 = vmatpush.msra.mxu0 0.0
    %1494 = vmatpush.msra.mxu0 %v735
    %1495 = vmatpush.msra.mxu0 %v733
    %1496 = vmatpush.msra.mxu0 %v731
    %1497 = vmatpush.msra.mxu0 %v729
    %1498 = vmatpush.msra.mxu0 %v727
    %1499 = vmatpush.msra.mxu0 %v725
    %1500 = vmatpush.msra.mxu0 %v723
    %1501 = vmatpush.msra.mxu0 %v721
    %1502 = vmatmul.f32.gmra.mxu0 %v1484
    %v1503 = vpop.f32.mrf.mxu0
    %v1504 = vadd.f32 0.0, %v1503
    %1505 = vdwg.mxu0
    %1506 = vmatpush.msra.mxu0 0.0
    %1507 = vmatpush.msra.mxu0 0.0
    %1508 = vmatpush.msra.mxu0 0.0
    %1509 = vmatpush.msra.mxu0 0.0
    %1510 = vmatpush.msra.mxu0 0.0
    %1511 = vmatpush.msra.mxu0 0.0
    %1512 = vmatpush.msra.mxu0 0.0
    %1513 = vmatpush.msra.mxu0 0.0
    %1514 = vmatpush.msra.mxu0 %v736
    %1515 = vmatpush.msra.mxu0 %v734
    %1516 = vmatpush.msra.mxu0 %v732
    %1517 = vmatpush.msra.mxu0 %v730
    %1518 = vmatpush.msra.mxu0 %v728
    %1519 = vmatpush.msra.mxu0 %v726
    %1520 = vmatpush.msra.mxu0 %v724
    %1521 = vmatpush.msra.mxu0 %v722
    %1522 = vmatmul.f32.gmra.mxu0 %v1484
    %v1523 = vpop.f32.mrf.mxu0
    %v1524 = vadd.f32 0.0, %v1523
    %1525 = vdwg.mxu0
    %v1528 = vrot.slane %v1504, 4
    %v1529 = vrot.slane %v1524, 4
    %v1532 = vadd.f32 %v717, %v1528
    %v1533 = vadd.f32 %v720, %v1529
    %v1534 = vxor.u32 %v1532, 2147483648
    %v1535 = vxor.u32 %v1533, 2147483648
    %v1536 = vmul.f32 %v1534, 1.442695
    %v1537 = vpow.pop %v1536
    %v1538 = vmul.f32 %v1535, 1.442695
    %v1539 = vpow.pop %v1538
    %v1540 = vadd.f32 %v1537, 1.0
    %v1541 = vadd.f32 %v1539, 1.0
    %v1542 = vrcp.pop %v1540
    %v1543 = vmul.f32 %v1540, %v1542
    %v1544 = vsub.f32 1.0, %v1543
    %v1545 = vmul.f32 %v1542, %v1544
    %v1546 = vadd.f32 %v1542, %v1545
    %vm1547 = vweird.f32 %v1540
    %vm1548 = vweird.f32 %v1542
    %vm1549 = vmor %vm1547, %vm1548
    %v1550 = vsel %vm1549, %v1542, %v1546
    %v1551 = vand.u32 2147483647, %v1540
    %vm1552 = vcmp.eq.f32.partialorder %v1551, 8.507059e+37
    %v1553 = vand.u32 %v1540, 2147483648
    %v1554 = vor.u32 1.1754944e-38, %v1553
    %v1555 = vsel %vm1552, %v1554, %v1550
    %v1556 = vmul.f32 1.0, %v1555
    %v1557 = vrcp.pop %v1541
    %v1558 = vmul.f32 %v1541, %v1557
    %v1559 = vsub.f32 1.0, %v1558
    %v1560 = vmul.f32 %v1557, %v1559
    %v1561 = vadd.f32 %v1557, %v1560
    %vm1562 = vweird.f32 %v1541
    %vm1563 = vweird.f32 %v1557
    %vm1564 = vmor %vm1562, %vm1563
    %v1565 = vsel %vm1564, %v1557, %v1561
    %v1566 = vand.u32 2147483647, %v1541
    %vm1567 = vcmp.eq.f32.partialorder %v1566, 8.507059e+37
    %v1568 = vand.u32 %v1541, 2147483648
    %v1569 = vor.u32 1.1754944e-38, %v1568
    %v1570 = vsel %vm1567, %v1569, %v1565
    %v1571 = vmul.f32 1.0, %v1570
    %v1572 = vtanh.pop %v1533
    %v1574 = vrot.slane %v1476, 4
    %v1576 = vmul.f32 %v1556, %v1574
    %1578 = vrot.lane.b32.xlu0 %v1572, 64
    %v1579 = vpop.permute.xlu0 %1578
    %v1581 = vmul.f32 %v1556, %v1579
    %1583 = vrot.lane.b32.xlu0 %v1581, 64
    %v1584 = vpop.permute.xlu0 %1583
    %v1586 = vadd.f32 %v1576, %v1584
    %v1587 = vtanh.pop %v1586
    %1589 = vrot.lane.b32.xlu0 %v1587, 64
    %v1590 = vpop.permute.xlu0 %1589
    %v1592 = vmul.f32 %v1571, %v1590
    %v1594 = vrot.slane %v1592, 4
    %v1596 = vsel %vm51, %v837, %v1594
    %v1597 = vrot.slane %v1482, 4
    %v1599 = vsel %vm51, %v947, %v1597
    %v1601 = vsel %vm51, %v1052, %v1379
    %v1602 = vrot.slane %v1267, 4
    %v1604 = vsel %vm51, %v1162, %v1602
    %v1606 = vsel %vm51, %v1267, %v1164
    %v1607 = vrot.slane %v1052, 4
    %v1609 = vsel %vm51, %v1377, %v1607
    %v1611 = vsel %vm51, %v1482, %v949
    %v1612 = vrot.slane %v837, 4
    %v1614 = vsel %vm51, %v1592, %v1612
    %v1616 = vrot.slane %v1599, 3
    %v1619 = vrot.slane %v1601, 6
    %v1622 = vrot.slane %v1604, 1
    %v1625 = vrot.slane %v1606, 4
    %v1628 = vrot.slane %v1609, 7
    %v1631 = vrot.slane %v1611, 2
    %v1634 = vrot.slane %v1614, 5
    %v1636 = vsel %vm460, %v1596, %v1616
    %v1637 = vsel %vm462, %v1636, %v1619
    %v1638 = vsel %vm464, %v1637, %v1622
    %v1639 = vsel %vm466, %v1638, %v1625
    %v1640 = vsel %vm468, %v1639, %v1628
    %v1641 = vsel %vm470, %v1640, %v1631
    %v1642 = vsel %vm472, %v1641, %v1634
    %v1644 = vrot.slane %v1596, 2
    %v1646 = vrot.slane %v1599, 5
    %v1648 = vrot.slane %v1604, 3
    %v1650 = vrot.slane %v1606, 6
    %v1652 = vrot.slane %v1609, 1
    %v1654 = vrot.slane %v1611, 4
    %v1656 = vrot.slane %v1614, 7
    %v1658 = vsel %vm460, %v1644, %v1646
    %v1659 = vsel %vm462, %v1658, %v1601
    %v1660 = vsel %vm464, %v1659, %v1648
    %v1661 = vsel %vm466, %v1660, %v1650
    %v1662 = vsel %vm468, %v1661, %v1652
    %v1663 = vsel %vm470, %v1662, %v1654
    %v1664 = vsel %vm472, %v1663, %v1656
    %v1666 = vsel %vm630, %v1642, 0
    %v1669 = vsel %vm630, %v1664, 0
    %1671 = vmatpush.xpose.msra.mxu0 0.0
    %1672 = vmatpush.xpose.msra.mxu0 0.0
    %1673 = vmatpush.xpose.msra.mxu0 0.0
    %1674 = vmatpush.xpose.msra.mxu0 0.0
    %1675 = vmatpush.xpose.msra.mxu0 0.0
    %1676 = vmatpush.xpose.msra.mxu0 0.0
    %1677 = vmatpush.xpose.msra.mxu0 0.0
    %1678 = vmatpush.xpose.msra.mxu0 0.0
    %1679 = vmatpush.xpose.msra.mxu0 0.0
    %1680 = vmatpush.xpose.msra.mxu0 0.0
    %1681 = vmatpush.xpose.msra.mxu0 0.0
    %1682 = vmatpush.xpose.msra.mxu0 0.0
    %1683 = vmatpush.xpose.msra.mxu0 0.0
    %1684 = vmatpush.xpose.msra.mxu0 0.0
    %1685 = vmatpush.xpose.msra.mxu0 0.0
    %1686 = vmatpush.xpose.msra.mxu0 %v1669
    %1687 = vmatmul.f32.gmra.mxu0 %v1666
    %v1688 = vpop.f32.mrf.mxu0
    %v1689 = vadd.f32 0.0, %v1688
    %1690 = vdwg.mxu0
    %v1691 = vrot.slane %v1596, 1
    %v1693 = vrot.slane %v1599, 4
    %v1695 = vrot.slane %v1601, 7
    %v1697 = vrot.slane %v1604, 2
    %v1699 = vrot.slane %v1606, 5
    %v1701 = vrot.slane %v1611, 3
    %v1703 = vrot.slane %v1614, 6
    %v1705 = vsel %vm460, %v1691, %v1693
    %v1706 = vsel %vm462, %v1705, %v1695
    %v1707 = vsel %vm464, %v1706, %v1697
    %v1708 = vsel %vm466, %v1707, %v1699
    %v1709 = vsel %vm468, %v1708, %v1609
    %v1710 = vsel %vm470, %v1709, %v1701
    %v1711 = vsel %vm472, %v1710, %v1703
    %v1712 = vrot.slane %v1596, 3
    %v1714 = vrot.slane %v1599, 6
    %v1716 = vrot.slane %v1601, 1
    %v1718 = vrot.slane %v1604, 4
    %v1720 = vrot.slane %v1606, 7
    %v1722 = vrot.slane %v1609, 2
    %v1724 = vrot.slane %v1611, 5
    %v1726 = vsel %vm460, %v1712, %v1714
    %v1727 = vsel %vm462, %v1726, %v1716
    %v1728 = vsel %vm464, %v1727, %v1718
    %v1729 = vsel %vm466, %v1728, %v1720
    %v1730 = vsel %vm468, %v1729, %v1722
    %v1731 = vsel %vm470, %v1730, %v1724
    %v1732 = vsel %vm472, %v1731, %v1614
    %v1734 = vsel %vm630, %v1711, 0
    %v1737 = vsel %vm630, %v1732, 0
    %1739 = vmatpush.xpose.msra.mxu0 0.0
    %1740 = vmatpush.xpose.msra.mxu0 0.0
    %1741 = vmatpush.xpose.msra.mxu0 0.0
    %1742 = vmatpush.xpose.msra.mxu0 0.0
    %1743 = vmatpush.xpose.msra.mxu0 0.0
    %1744 = vmatpush.xpose.msra.mxu0 0.0
    %1745 = vmatpush.xpose.msra.mxu0 0.0
    %1746 = vmatpush.xpose.msra.mxu0 0.0
    %1747 = vmatpush.xpose.msra.mxu0 0.0
    %1748 = vmatpush.xpose.msra.mxu0 0.0
    %1749 = vmatpush.xpose.msra.mxu0 0.0
    %1750 = vmatpush.xpose.msra.mxu0 0.0
    %1751 = vmatpush.xpose.msra.mxu0 0.0
    %1752 = vmatpush.xpose.msra.mxu0 0.0
    %1753 = vmatpush.xpose.msra.mxu0 0.0
    %1754 = vmatpush.xpose.msra.mxu0 %v1737
    %1755 = vmatmul.f32.gmra.mxu0 %v1734
    %v1756 = vpop.f32.mrf.mxu0
    %v1757 = vadd.f32 0.0, %v1756
    %1758 = vdwg.mxu0
    %1759 = vst.msk [vmem:[#allocation2] sm:$0xff] %vm176, %v1689
    %1760 = vst.msk [vmem:[#allocation2 + $0x8] sm:$0xff] %vm176, %v1757
    // Predicated region
    $region46: #{cat_bilstm_forward.1} parent=1 // pred_check
      _
    $region47: #{cat_bilstm_forward.1} parent=1 // pred_check_branch
      %1762 = sbr.rel (0) target = $region49
    $region48: #{cat_bilstm_forward.1} parent=1 // pred_region
      %1764 = vsyncadd [#allocation3], 0
      %s1765 = sshll.u32 [#allocation2], 4
      %s1766 = int_to_ptr.vmem [resolvable:$true] %s1765
      %s1767 = sshll.u32 %s11, 4
      %s1768 = int_to_ptr.hbm [resolvable:$true] %s1767
      %1773 = dma.vmem_to_hbm [thread:$0]  %s1766, 256, %s1768, [#allocation3], 128, 128, 8
    $region49: #{cat_bilstm_forward.1} parent=1 // pred_fallthru
      _
    // Predicated region
    $region50: #{cat_bilstm_forward.1} parent=1 // pred_check
      _
    $region51: #{cat_bilstm_forward.1} parent=1 // pred_check_branch
      %1775 = sbr.rel (0) target = $region53
    $region52: #{cat_bilstm_forward.1} parent=1 // pred_region
      %1777 = dma.done [#allocation3], 256
    $region53: #{cat_bilstm_forward.1} parent=1 // pred_fallthru
      _
    %1778 = vsyncpa [#allocation3], 1

</llo_original>
